<compile_context>
chip_gen: v5e
topology: v5e:2x2
jax: 0.10.0
libtpu: 0.0.40
codegen_flags: <defaults>
</compile_context>

<pallas_src>
import math
import numpy as np
import jax
import jax.numpy as jnp
from jax import lax
from jax.experimental import pallas as pl
from jax.experimental.pallas import tpu as pltpu

# ---------------- model config (small, consistent with the module) ----------
B_EX = 2             # batch
T_EX = 8             # sequence length (block_size)
C_EX = 32            # n_embd
H_EX = 4             # n_head
LN_EPS = 1e-5


def _layernorm(x, gamma, beta):
    # x: (N, C), gamma/beta: (1, C); biased variance (matches nn.LayerNorm)
    mu = jnp.mean(x, axis=-1, keepdims=True)
    var = jnp.mean((x - mu) * (x - mu), axis=-1, keepdims=True)
    xhat = (x - mu) * lax.rsqrt(var + LN_EPS)
    return xhat * gamma + beta


def _gelu_tanh(x):
    # GPT-2 tanh-approximate GELU
    c = math.sqrt(2.0 / math.pi)
    return 0.5 * x * (1.0 + jnp.tanh(c * (x + 0.044715 * x * x * x)))


def make_block_kernel(n_head):
    H = n_head

    def block_kernel(x_ref, bias_ref,
                     ln1_g_ref, ln1_b_ref,
                     w_qh_ref, w_kh_ref, w_vh_ref,
                     b_qh_ref, b_kh_ref, b_vh_ref,
                     w_aph_ref, b_ap_ref,
                     ln2_g_ref, ln2_b_ref,
                     w_fc_ref, b_fc_ref,
                     w_mp_ref, b_mp_ref,
                     o_ref):
        x = x_ref[...]                          # (B*T, C) float32
        BT, C = x.shape

        # ---- ln_1 ----
        h1 = _layernorm(x, ln1_g_ref[...], ln1_b_ref[...])

        # Precomputed additive attention bias: 0 where (same batch AND causal),
        # -1e30 elsewhere.  Loaded once, reused by every head.
        bias = bias_ref[...]                    # (B*T, B*T)

        # ---- causal self-attention, heads accumulated into the output proj ----
        acc = jnp.zeros((BT, C), jnp.float32)
        for h in range(H):                      # static unroll; H is tiny
            # 1/sqrt(D) scale is pre-folded into w_qh / b_qh (wrapper side).
            qh = jnp.dot(h1, w_qh_ref[h],
                         preferred_element_type=jnp.float32) + b_qh_ref[h]   # (BT, D)
            kh = jnp.dot(h1, w_kh_ref[h],
                         preferred_element_type=jnp.float32) + b_kh_ref[h]   # (BT, D)
            vh = jnp.dot(h1, w_vh_ref[h],
                         preferred_element_type=jnp.float32) + b_vh_ref[h]   # (BT, D)

            s = jnp.dot(qh, kh.T, preferred_element_type=jnp.float32) + bias  # (BT, BT)
            m = jnp.max(s, axis=-1, keepdims=True)
            p = jnp.exp(s - m)
            denom = jnp.sum(p, axis=-1, keepdims=True)
            p = p * pl.reciprocal(denom, approx=True)

            yh = jnp.dot(p, vh, preferred_element_type=jnp.float32)           # (BT, D)
            # head's slice of the output projection: (BT,D) @ (D,C) -> (BT,C)
            acc = acc + jnp.dot(yh, w_aph_ref[h],
                                preferred_element_type=jnp.float32)

        x1 = x + acc + b_ap_ref[...]            # attention residual

        # ---- ln_2 + MLP (fc -> tanh-GELU -> proj) + residual ----
        h2 = _layernorm(x1, ln2_g_ref[...], ln2_b_ref[...])
        ff = jnp.dot(h2, w_fc_ref[...],
                     preferred_element_type=jnp.float32) + b_fc_ref[...]      # (BT, 4C)
        ff = _gelu_tanh(ff)
        mlp = jnp.dot(ff, w_mp_ref[...],
                      preferred_element_type=jnp.float32) + b_mp_ref[...]     # (BT, C)

        o_ref[...] = x1 + mlp

    return block_kernel


def block_forward(x, kparams, *, n_head):
    """x: (B, T, C) float32; kparams: kernel-layout params from prepare_params."""
    B, T, C = x.shape
    x2 = x.reshape(B * T, C)                    # free layout plumbing in XLA

    # Block-diagonal causal mask over the flattened (B*T) axis, as an additive
    # bias constant (computed once at trace time, no in-kernel iota/div/select).
    idx = np.arange(B * T)
    allowed = (idx[:, None] >= idx[None, :]) & \
              ((idx[:, None] // T) == (idx[None, :] // T))
    attn_bias = jnp.asarray(np.where(allowed, 0.0, -1e30), dtype=jnp.float32)

    kp = kparams
    args = [x2, attn_bias,
            kp["ln1_g"], kp["ln1_b"],
            kp["w_qh"], kp["w_kh"], kp["w_vh"],
            kp["b_qh"], kp["b_kh"], kp["b_vh"],
            kp["w_aph"], kp["b_ap"],
            kp["ln2_g"], kp["ln2_b"],
            kp["w_fc"], kp["b_fc"],
            kp["w_mp"], kp["b_mp"]]

    def full_spec(a):
        n = a.ndim
        return pl.BlockSpec(a.shape, lambda i, n=n: (0,) * n)

    out2 = pl.pallas_call(
        make_block_kernel(n_head),
        out_shape=jax.ShapeDtypeStruct((B * T, C), jnp.float32),
        grid_spec=pltpu.PrefetchScalarGridSpec(
            num_scalar_prefetch=0,
            grid=(1,),                                   # single invocation
            in_specs=[full_spec(a) for a in args],
            out_specs=pl.BlockSpec((B * T, C), lambda i: (0, 0)),
        ),
        compiler_params=pltpu.CompilerParams(
            dimension_semantics=("arbitrary",)),
    )(*args)

    return out2.reshape(B, T, C)


def init_params(key, C):
    ks = jax.random.split(key, 4)
    std = 0.02
    # Linear weights stored as (in_features, out_features): kernel does x @ W + b,
    # equivalent to PyTorch's x @ W.T + b with W=(out, in).
    return {
        "ln1_g": jnp.ones((1, C), jnp.float32),
        "ln1_b": jnp.zeros((1, C), jnp.float32),
        "w_attn": std * jax.random.normal(ks[0], (C, 3 * C), jnp.float32),
        "b_attn": jnp.zeros((1, 3 * C), jnp.float32),
        "w_attn_proj": std * jax.random.normal(ks[1], (C, C), jnp.float32),
        "b_attn_proj": jnp.zeros((1, C), jnp.float32),
        "ln2_g": jnp.ones((1, C), jnp.float32),
        "ln2_b": jnp.zeros((1, C), jnp.float32),
        "w_fc": std * jax.random.normal(ks[2], (C, 4 * C), jnp.float32),
        "b_fc": jnp.zeros((1, 4 * C), jnp.float32),
        "w_mlp_proj": std * jax.random.normal(ks[3], (4 * C, C), jnp.float32),
        "b_mlp_proj": jnp.zeros((1, C), jnp.float32),
    }


def prepare_params(p, n_head):
    """One-time wrapper-side re-layout: split QKV per head, fold 1/sqrt(D) into Q."""
    C = p["ln1_g"].shape[-1]
    H = n_head
    D = C // H
    scale = 1.0 / math.sqrt(D)

    w_attn = p["w_attn"]                       # (C, 3C)
    b_attn = p["b_attn"].reshape(3 * C)
    w_q, w_k, w_v = w_attn[:, :C], w_attn[:, C:2 * C], w_attn[:, 2 * C:]
    b_q, b_k, b_v = b_attn[:C], b_attn[C:2 * C], b_attn[2 * C:]

    def per_head_w(w):                         # (C, C) -> (H, C, D)
        return jnp.transpose(w.reshape(C, H, D), (1, 0, 2))

    def per_head_b(b):                         # (C,) -> (H, 1, D)
        return b.reshape(H, 1, D)

    return {
        "ln1_g": p["ln1_g"], "ln1_b": p["ln1_b"],
        "w_qh": per_head_w(w_q) * scale,       # scale folded into Q weights
        "w_kh": per_head_w(w_k),
        "w_vh": per_head_w(w_v),
        "b_qh": per_head_b(b_q) * scale,       # ... and Q bias
        "b_kh": per_head_b(b_k),
        "b_vh": per_head_b(b_v),
        "w_aph": p["w_attn_proj"].reshape(H, D, C),  # per-head rows of c_proj
        "b_ap": p["b_attn_proj"],
        "ln2_g": p["ln2_g"], "ln2_b": p["ln2_b"],
        "w_fc": p["w_fc"], "b_fc": p["b_fc"],
        "w_mp": p["w_mlp_proj"], "b_mp": p["b_mlp_proj"],
    }


def block_reference(x, p, n_head):
    """Pure-JAX reference matching the PyTorch Block forward."""
    B, T, C = x.shape
    H = n_head
    D = C // H

    def ln(z, g, b):
        mu = jnp.mean(z, axis=-1, keepdims=True)
        var = jnp.mean((z - mu) ** 2, axis=-1, keepdims=True)
        return (z - mu) / jnp.sqrt(var + LN_EPS) * g + b

    h1 = ln(x, p["ln1_g"], p["ln1_b"])
    qkv = h1 @ p["w_attn"] + p["b_attn"]
    q, k, v = jnp.split(qkv, 3, axis=-1)
    q = q.reshape(B, T, H, D).transpose(0, 2, 1, 3)
    k = k.reshape(B, T, H, D).transpose(0, 2, 1, 3)
    v = v.reshape(B, T, H, D).transpose(0, 2, 1, 3)
    s = (q @ jnp.swapaxes(k, -1, -2)) / math.sqrt(D)
    causal = jnp.tril(jnp.ones((T, T), bool))
    s = jnp.where(causal, s, -jnp.inf)
    a = jax.nn.softmax(s, axis=-1)
    y = (a @ v).transpose(0, 2, 1, 3).reshape(B, T, C)
    y = y @ p["w_attn_proj"] + p["b_attn_proj"]
    x1 = x + y
    h2 = ln(x1, p["ln2_g"], p["ln2_b"])
    ff = h2 @ p["w_fc"] + p["b_fc"]
    c = math.sqrt(2.0 / math.pi)
    ff = 0.5 * ff * (1.0 + jnp.tanh(c * (ff + 0.044715 * ff ** 3)))
    return x1 + ff @ p["w_mlp_proj"] + p["b_mlp_proj"]


if __name__ == "__main__":
    key = jax.random.PRNGKey(0)
    kx, kp = jax.random.split(key)
    x = jax.random.normal(kx, (B_EX, T_EX, C_EX), jnp.float32)
    params = init_params(kp, C_EX)
    kparams = prepare_params(params, H_EX)

    out = block_forward(x, kparams, n_head=H_EX)
    out = jax.block_until_ready(out)

    assert out.shape == (B_EX, T_EX, C_EX)
    assert bool(jnp.all(jnp.isfinite(out)))

    ref = block_reference(x, params, H_EX)
    err = float(jnp.max(jnp.abs(out - ref)))
    assert err < 1e-2, f"max abs err vs reference: {err}"

    print("KERNEL_OK")
</pallas_src>

<mosaic_0001>
module attributes {stable_mosaic.version = 11 : i64} {
  func.func @block_kernel(%arg0: i32, %arg1: memref<16x32xf32, #tpu.memory_space<vmem>>, %arg2: memref<16x16xf32, #tpu.memory_space<vmem>>, %arg3: memref<1x32xf32, #tpu.memory_space<vmem>>, %arg4: memref<1x32xf32, #tpu.memory_space<vmem>>, %arg5: memref<4x32x8xf32, #tpu.memory_space<vmem>>, %arg6: memref<4x32x8xf32, #tpu.memory_space<vmem>>, %arg7: memref<4x32x8xf32, #tpu.memory_space<vmem>>, %arg8: memref<4x1x8xf32, #tpu.memory_space<vmem>>, %arg9: memref<4x1x8xf32, #tpu.memory_space<vmem>>, %arg10: memref<4x1x8xf32, #tpu.memory_space<vmem>>, %arg11: memref<4x8x32xf32, #tpu.memory_space<vmem>>, %arg12: memref<1x32xf32, #tpu.memory_space<vmem>>, %arg13: memref<1x32xf32, #tpu.memory_space<vmem>>, %arg14: memref<1x32xf32, #tpu.memory_space<vmem>>, %arg15: memref<32x128xf32, #tpu.memory_space<vmem>>, %arg16: memref<1x128xf32, #tpu.memory_space<vmem>>, %arg17: memref<128x32xf32, #tpu.memory_space<vmem>>, %arg18: memref<1x32xf32, #tpu.memory_space<vmem>>, %arg19: memref<16x32xf32, #tpu.memory_space<vmem>>) attributes {dimension_semantics = [#tpu.dimension_semantics<arbitrary>], iteration_bounds = array<i64: 1>, scalar_prefetch = 0 : i64, scratch_operands = 0 : i64, tpu.core_type = #tpu.core_type<tc>, window_params = [{pipeline_mode = #tpu.pipeline_mode<synchronous>, transform_indices = @transform_0, window_bounds = array<i64: 16, 32>}, {pipeline_mode = #tpu.pipeline_mode<synchronous>, transform_indices = @transform_1, window_bounds = array<i64: 16, 16>}, {pipeline_mode = #tpu.pipeline_mode<synchronous>, transform_indices = @transform_2, window_bounds = array<i64: 1, 32>}, {pipeline_mode = #tpu.pipeline_mode<synchronous>, transform_indices = @transform_3, window_bounds = array<i64: 1, 32>}, {pipeline_mode = #tpu.pipeline_mode<synchronous>, transform_indices = @transform_4, window_bounds = array<i64: 4, 32, 8>}, {pipeline_mode = #tpu.pipeline_mode<synchronous>, transform_indices = @transform_5, window_bounds = array<i64: 4, 32, 8>}, {pipeline_mode = #tpu.pipeline_mode<synchronous>, transform_indices = @transform_6, window_bounds = array<i64: 4, 32, 8>}, {pipeline_mode = #tpu.pipeline_mode<synchronous>, transform_indices = @transform_7, window_bounds = array<i64: 4, 1, 8>}, {pipeline_mode = #tpu.pipeline_mode<synchronous>, transform_indices = @transform_8, window_bounds = array<i64: 4, 1, 8>}, {pipeline_mode = #tpu.pipeline_mode<synchronous>, transform_indices = @transform_9, window_bounds = array<i64: 4, 1, 8>}, {pipeline_mode = #tpu.pipeline_mode<synchronous>, transform_indices = @transform_10, window_bounds = array<i64: 4, 8, 32>}, {pipeline_mode = #tpu.pipeline_mode<synchronous>, transform_indices = @transform_11, window_bounds = array<i64: 1, 32>}, {pipeline_mode = #tpu.pipeline_mode<synchronous>, transform_indices = @transform_12, window_bounds = array<i64: 1, 32>}, {pipeline_mode = #tpu.pipeline_mode<synchronous>, transform_indices = @transform_13, window_bounds = array<i64: 1, 32>}, {pipeline_mode = #tpu.pipeline_mode<synchronous>, transform_indices = @transform_14, window_bounds = array<i64: 32, 128>}, {pipeline_mode = #tpu.pipeline_mode<synchronous>, transform_indices = @transform_15, window_bounds = array<i64: 1, 128>}, {pipeline_mode = #tpu.pipeline_mode<synchronous>, transform_indices = @transform_16, window_bounds = array<i64: 128, 32>}, {pipeline_mode = #tpu.pipeline_mode<synchronous>, transform_indices = @transform_17, window_bounds = array<i64: 1, 32>}, {pipeline_mode = #tpu.pipeline_mode<synchronous>, transform_indices = @transform_18, window_bounds = array<i64: 16, 32>}]} {
    %c0 = arith.constant 0 : index
    %c0_0 = arith.constant 0 : index
    %0 = vector.load %arg1[%c0, %c0_0] : memref<16x32xf32, #tpu.memory_space<vmem>>, vector<16x32xf32>
    %c0_1 = arith.constant 0 : index
    %c0_2 = arith.constant 0 : index
    %1 = vector.load %arg3[%c0_1, %c0_2] : memref<1x32xf32, #tpu.memory_space<vmem>>, vector<1x32xf32>
    %c0_3 = arith.constant 0 : index
    %c0_4 = arith.constant 0 : index
    %2 = vector.load %arg4[%c0_3, %c0_4] : memref<1x32xf32, #tpu.memory_space<vmem>>, vector<1x32xf32>
    %cst = arith.constant dense<0.000000e+00> : vector<16xf32>
    %3 = vector.multi_reduction <add>, %0, %cst [1] : vector<16x32xf32> to vector<16xf32>
    %4 = vector.shape_cast %3 : vector<16xf32> to vector<16x1xf32>
    %cst_5 = arith.constant 3.200000e+01 : f32
    %5 = vector.broadcast %cst_5 : f32 to vector<16x1xf32>
    %6 = arith.divf %4, %5 : vector<16x1xf32>
    %7 = vector.broadcast %6 : vector<16x1xf32> to vector<16x32xf32>
    %8 = arith.subf %0, %7 : vector<16x32xf32>
    %9 = vector.broadcast %6 : vector<16x1xf32> to vector<16x32xf32>
    %10 = arith.subf %0, %9 : vector<16x32xf32>
    %11 = arith.mulf %8, %10 : vector<16x32xf32>
    %cst_6 = arith.constant dense<0.000000e+00> : vector<16xf32>
    %12 = vector.multi_reduction <add>, %11, %cst_6 [1] : vector<16x32xf32> to vector<16xf32>
    %13 = vector.shape_cast %12 : vector<16xf32> to vector<16x1xf32>
    %cst_7 = arith.constant 3.200000e+01 : f32
    %14 = vector.broadcast %cst_7 : f32 to vector<16x1xf32>
    %15 = arith.divf %13, %14 : vector<16x1xf32>
    %16 = vector.broadcast %6 : vector<16x1xf32> to vector<16x32xf32>
    %17 = arith.subf %0, %16 : vector<16x32xf32>
    %cst_8 = arith.constant 9.99999974E-6 : f32
    %18 = vector.broadcast %cst_8 : f32 to vector<16x1xf32>
    %19 = arith.addf %15, %18 : vector<16x1xf32>
    %20 = math.rsqrt %19 : vector<16x1xf32>
    %21 = vector.broadcast %20 : vector<16x1xf32> to vector<16x32xf32>
    %22 = arith.mulf %17, %21 : vector<16x32xf32>
    %23 = vector.broadcast %1 : vector<1x32xf32> to vector<16x32xf32>
    %24 = arith.mulf %22, %23 : vector<16x32xf32>
    %25 = vector.broadcast %2 : vector<1x32xf32> to vector<16x32xf32>
    %26 = arith.addf %24, %25 : vector<16x32xf32>
    %c0_9 = arith.constant 0 : index
    %c0_10 = arith.constant 0 : index
    %27 = vector.load %arg2[%c0_9, %c0_10] : memref<16x16xf32, #tpu.memory_space<vmem>>, vector<16x16xf32>
    %cst_11 = arith.constant 0.000000e+00 : f32
    %28 = vector.broadcast %cst_11 : f32 to vector<16x32xf32>
    %c0_12 = arith.constant 0 : index
    %c0_13 = arith.constant 0 : index
    %c0_14 = arith.constant 0 : index
    %29 = vector.load %arg5[%c0_12, %c0_13, %c0_14] : memref<4x32x8xf32, #tpu.memory_space<vmem>>, vector<1x32x8xf32>
    %30 = vector.shape_cast %29 : vector<1x32x8xf32> to vector<32x8xf32>
    %cst_15 = arith.constant dense<0.000000e+00> : vector<16x8xf32>
    %31 = tpu.matmul %26, %30, %cst_15 {dimension_numbers = #tpu.dot_dimension_numbers<[1], [0], [0], [1], [0, 0, 1, 1], [], []>} : vector<16x32xf32>, vector<32x8xf32>, vector<16x8xf32> -> vector<16x8xf32>
    %c0_16 = arith.constant 0 : index
    %c0_17 = arith.constant 0 : index
    %c0_18 = arith.constant 0 : index
    %32 = vector.load %arg8[%c0_16, %c0_17, %c0_18] : memref<4x1x8xf32, #tpu.memory_space<vmem>>, vector<1x1x8xf32>
    %33 = vector.shape_cast %32 : vector<1x1x8xf32> to vector<1x8xf32>
    %34 = vector.broadcast %33 : vector<1x8xf32> to vector<16x8xf32>
    %35 = arith.addf %31, %34 : vector<16x8xf32>
    %c0_19 = arith.constant 0 : index
    %c0_20 = arith.constant 0 : index
    %c0_21 = arith.constant 0 : index
    %36 = vector.load %arg6[%c0_19, %c0_20, %c0_21] : memref<4x32x8xf32, #tpu.memory_space<vmem>>, vector<1x32x8xf32>
    %37 = vector.shape_cast %36 : vector<1x32x8xf32> to vector<32x8xf32>
    %cst_22 = arith.constant dense<0.000000e+00> : vector<16x8xf32>
    %38 = tpu.matmul %26, %37, %cst_22 {dimension_numbers = #tpu.dot_dimension_numbers<[1], [0], [0], [1], [0, 0, 1, 1], [], []>} : vector<16x32xf32>, vector<32x8xf32>, vector<16x8xf32> -> vector<16x8xf32>
    %c0_23 = arith.constant 0 : index
    %c0_24 = arith.constant 0 : index
    %c0_25 = arith.constant 0 : index
    %39 = vector.load %arg9[%c0_23, %c0_24, %c0_25] : memref<4x1x8xf32, #tpu.memory_space<vmem>>, vector<1x1x8xf32>
    %40 = vector.shape_cast %39 : vector<1x1x8xf32> to vector<1x8xf32>
    %41 = vector.broadcast %40 : vector<1x8xf32> to vector<16x8xf32>
    %42 = arith.addf %38, %41 : vector<16x8xf32>
    %c0_26 = arith.constant 0 : index
    %c0_27 = arith.constant 0 : index
    %c0_28 = arith.constant 0 : index
    %43 = vector.load %arg7[%c0_26, %c0_27, %c0_28] : memref<4x32x8xf32, #tpu.memory_space<vmem>>, vector<1x32x8xf32>
    %44 = vector.shape_cast %43 : vector<1x32x8xf32> to vector<32x8xf32>
    %cst_29 = arith.constant dense<0.000000e+00> : vector<16x8xf32>
    %45 = tpu.matmul %26, %44, %cst_29 {dimension_numbers = #tpu.dot_dimension_numbers<[1], [0], [0], [1], [0, 0, 1, 1], [], []>} : vector<16x32xf32>, vector<32x8xf32>, vector<16x8xf32> -> vector<16x8xf32>
    %c0_30 = arith.constant 0 : index
    %c0_31 = arith.constant 0 : index
    %c0_32 = arith.constant 0 : index
    %46 = vector.load %arg10[%c0_30, %c0_31, %c0_32] : memref<4x1x8xf32, #tpu.memory_space<vmem>>, vector<1x1x8xf32>
    %47 = vector.shape_cast %46 : vector<1x1x8xf32> to vector<1x8xf32>
    %48 = vector.broadcast %47 : vector<1x8xf32> to vector<16x8xf32>
    %49 = arith.addf %45, %48 : vector<16x8xf32>
    %50 = tpu.transpose %42, [1, 0] : vector<16x8xf32> -> vector<8x16xf32>
    %cst_33 = arith.constant dense<0.000000e+00> : vector<16x16xf32>
    %51 = tpu.matmul %35, %50, %cst_33 {dimension_numbers = #tpu.dot_dimension_numbers<[1], [0], [0], [1], [0, 0, 1, 1], [], []>} : vector<16x8xf32>, vector<8x16xf32>, vector<16x16xf32> -> vector<16x16xf32>
    %52 = arith.addf %51, %27 : vector<16x16xf32>
    %cst_34 = arith.constant dense<0xFF800000> : vector<16xf32>
    %53 = vector.multi_reduction <maximumf>, %52, %cst_34 [1] : vector<16x16xf32> to vector<16xf32>
    %54 = vector.shape_cast %53 : vector<16xf32> to vector<16x1xf32>
    %55 = vector.broadcast %54 : vector<16x1xf32> to vector<16x16xf32>
    %56 = arith.subf %52, %55 : vector<16x16xf32>
    %57 = math.exp %56 : vector<16x16xf32>
    %cst_35 = arith.constant dense<0.000000e+00> : vector<16xf32>
    %58 = vector.multi_reduction <add>, %57, %cst_35 [1] : vector<16x16xf32> to vector<16xf32>
    %59 = vector.shape_cast %58 : vector<16xf32> to vector<16x1xf32>
    %60 = tpu.reciprocal %59 {approx = true} : vector<16x1xf32> -> vector<16x1xf32>
    %61 = vector.broadcast %60 : vector<16x1xf32> to vector<16x16xf32>
    %62 = arith.mulf %57, %61 : vector<16x16xf32>
    %cst_36 = arith.constant dense<0.000000e+00> : vector<16x8xf32>
    %63 = tpu.matmul %62, %49, %cst_36 {dimension_numbers = #tpu.dot_dimension_numbers<[1], [0], [0], [1], [0, 0, 1, 1], [], []>} : vector<16x16xf32>, vector<16x8xf32>, vector<16x8xf32> -> vector<16x8xf32>
    %c0_37 = arith.constant 0 : index
    %c0_38 = arith.constant 0 : index
    %c0_39 = arith.constant 0 : index
    %64 = vector.load %arg11[%c0_37, %c0_38, %c0_39] : memref<4x8x32xf32, #tpu.memory_space<vmem>>, vector<1x8x32xf32>
    %65 = vector.shape_cast %64 : vector<1x8x32xf32> to vector<8x32xf32>
    %cst_40 = arith.constant dense<0.000000e+00> : vector<16x32xf32>
    %66 = tpu.matmul %63, %65, %cst_40 {dimension_numbers = #tpu.dot_dimension_numbers<[1], [0], [0], [1], [0, 0, 1, 1], [], []>} : vector<16x8xf32>, vector<8x32xf32>, vector<16x32xf32> -> vector<16x32xf32>
    %67 = arith.addf %28, %66 : vector<16x32xf32>
    %c1 = arith.constant 1 : index
    %c0_41 = arith.constant 0 : index
    %c0_42 = arith.constant 0 : index
    %68 = vector.load %arg5[%c1, %c0_41, %c0_42] : memref<4x32x8xf32, #tpu.memory_space<vmem>>, vector<1x32x8xf32>
    %69 = vector.shape_cast %68 : vector<1x32x8xf32> to vector<32x8xf32>
    %cst_43 = arith.constant dense<0.000000e+00> : vector<16x8xf32>
    %70 = tpu.matmul %26, %69, %cst_43 {dimension_numbers = #tpu.dot_dimension_numbers<[1], [0], [0], [1], [0, 0, 1, 1], [], []>} : vector<16x32xf32>, vector<32x8xf32>, vector<16x8xf32> -> vector<16x8xf32>
    %c1_44 = arith.constant 1 : index
    %c0_45 = arith.constant 0 : index
    %c0_46 = arith.constant 0 : index
    %71 = vector.load %arg8[%c1_44, %c0_45, %c0_46] : memref<4x1x8xf32, #tpu.memory_space<vmem>>, vector<1x1x8xf32>
    %72 = vector.shape_cast %71 : vector<1x1x8xf32> to vector<1x8xf32>
    %73 = vector.broadcast %72 : vector<1x8xf32> to vector<16x8xf32>
    %74 = arith.addf %70, %73 : vector<16x8xf32>
    %c1_47 = arith.constant 1 : index
    %c0_48 = arith.constant 0 : index
    %c0_49 = arith.constant 0 : index
    %75 = vector.load %arg6[%c1_47, %c0_48, %c0_49] : memref<4x32x8xf32, #tpu.memory_space<vmem>>, vector<1x32x8xf32>
    %76 = vector.shape_cast %75 : vector<1x32x8xf32> to vector<32x8xf32>
    %cst_50 = arith.constant dense<0.000000e+00> : vector<16x8xf32>
    %77 = tpu.matmul %26, %76, %cst_50 {dimension_numbers = #tpu.dot_dimension_numbers<[1], [0], [0], [1], [0, 0, 1, 1], [], []>} : vector<16x32xf32>, vector<32x8xf32>, vector<16x8xf32> -> vector<16x8xf32>
    %c1_51 = arith.constant 1 : index
    %c0_52 = arith.constant 0 : index
    %c0_53 = arith.constant 0 : index
    %78 = vector.load %arg9[%c1_51, %c0_52, %c0_53] : memref<4x1x8xf32, #tpu.memory_space<vmem>>, vector<1x1x8xf32>
    %79 = vector.shape_cast %78 : vector<1x1x8xf32> to vector<1x8xf32>
    %80 = vector.broadcast %79 : vector<1x8xf32> to vector<16x8xf32>
    %81 = arith.addf %77, %80 : vector<16x8xf32>
    %c1_54 = arith.constant 1 : index
    %c0_55 = arith.constant 0 : index
    %c0_56 = arith.constant 0 : index
    %82 = vector.load %arg7[%c1_54, %c0_55, %c0_56] : memref<4x32x8xf32, #tpu.memory_space<vmem>>, vector<1x32x8xf32>
    %83 = vector.shape_cast %82 : vector<1x32x8xf32> to vector<32x8xf32>
    %cst_57 = arith.constant dense<0.000000e+00> : vector<16x8xf32>
    %84 = tpu.matmul %26, %83, %cst_57 {dimension_numbers = #tpu.dot_dimension_numbers<[1], [0], [0], [1], [0, 0, 1, 1], [], []>} : vector<16x32xf32>, vector<32x8xf32>, vector<16x8xf32> -> vector<16x8xf32>
    %c1_58 = arith.constant 1 : index
    %c0_59 = arith.constant 0 : index
    %c0_60 = arith.constant 0 : index
    %85 = vector.load %arg10[%c1_58, %c0_59, %c0_60] : memref<4x1x8xf32, #tpu.memory_space<vmem>>, vector<1x1x8xf32>
    %86 = vector.shape_cast %85 : vector<1x1x8xf32> to vector<1x8xf32>
    %87 = vector.broadcast %86 : vector<1x8xf32> to vector<16x8xf32>
    %88 = arith.addf %84, %87 : vector<16x8xf32>
    %89 = tpu.transpose %81, [1, 0] : vector<16x8xf32> -> vector<8x16xf32>
    %cst_61 = arith.constant dense<0.000000e+00> : vector<16x16xf32>
    %90 = tpu.matmul %74, %89, %cst_61 {dimension_numbers = #tpu.dot_dimension_numbers<[1], [0], [0], [1], [0, 0, 1, 1], [], []>} : vector<16x8xf32>, vector<8x16xf32>, vector<16x16xf32> -> vector<16x16xf32>
    %91 = arith.addf %90, %27 : vector<16x16xf32>
    %cst_62 = arith.constant dense<0xFF800000> : vector<16xf32>
    %92 = vector.multi_reduction <maximumf>, %91, %cst_62 [1] : vector<16x16xf32> to vector<16xf32>
    %93 = vector.shape_cast %92 : vector<16xf32> to vector<16x1xf32>
    %94 = vector.broadcast %93 : vector<16x1xf32> to vector<16x16xf32>
    %95 = arith.subf %91, %94 : vector<16x16xf32>
    %96 = math.exp %95 : vector<16x16xf32>
    %cst_63 = arith.constant dense<0.000000e+00> : vector<16xf32>
    %97 = vector.multi_reduction <add>, %96, %cst_63 [1] : vector<16x16xf32> to vector<16xf32>
    %98 = vector.shape_cast %97 : vector<16xf32> to vector<16x1xf32>
    %99 = tpu.reciprocal %98 {approx = true} : vector<16x1xf32> -> vector<16x1xf32>
    %100 = vector.broadcast %99 : vector<16x1xf32> to vector<16x16xf32>
    %101 = arith.mulf %96, %100 : vector<16x16xf32>
    %cst_64 = arith.constant dense<0.000000e+00> : vector<16x8xf32>
    %102 = tpu.matmul %101, %88, %cst_64 {dimension_numbers = #tpu.dot_dimension_numbers<[1], [0], [0], [1], [0, 0, 1, 1], [], []>} : vector<16x16xf32>, vector<16x8xf32>, vector<16x8xf32> -> vector<16x8xf32>
    %c1_65 = arith.constant 1 : index
    %c0_66 = arith.constant 0 : index
    %c0_67 = arith.constant 0 : index
    %103 = vector.load %arg11[%c1_65, %c0_66, %c0_67] : memref<4x8x32xf32, #tpu.memory_space<vmem>>, vector<1x8x32xf32>
    %104 = vector.shape_cast %103 : vector<1x8x32xf32> to vector<8x32xf32>
    %cst_68 = arith.constant dense<0.000000e+00> : vector<16x32xf32>
    %105 = tpu.matmul %102, %104, %cst_68 {dimension_numbers = #tpu.dot_dimension_numbers<[1], [0], [0], [1], [0, 0, 1, 1], [], []>} : vector<16x8xf32>, vector<8x32xf32>, vector<16x32xf32> -> vector<16x32xf32>
    %106 = arith.addf %67, %105 : vector<16x32xf32>
    %c2 = arith.constant 2 : index
    %c0_69 = arith.constant 0 : index
    %c0_70 = arith.constant 0 : index
    %107 = vector.load %arg5[%c2, %c0_69, %c0_70] : memref<4x32x8xf32, #tpu.memory_space<vmem>>, vector<1x32x8xf32>
    %108 = vector.shape_cast %107 : vector<1x32x8xf32> to vector<32x8xf32>
    %cst_71 = arith.constant dense<0.000000e+00> : vector<16x8xf32>
    %109 = tpu.matmul %26, %108, %cst_71 {dimension_numbers = #tpu.dot_dimension_numbers<[1], [0], [0], [1], [0, 0, 1, 1], [], []>} : vector<16x32xf32>, vector<32x8xf32>, vector<16x8xf32> -> vector<16x8xf32>
    %c2_72 = arith.constant 2 : index
    %c0_73 = arith.constant 0 : index
    %c0_74 = arith.constant 0 : index
    %110 = vector.load %arg8[%c2_72, %c0_73, %c0_74] : memref<4x1x8xf32, #tpu.memory_space<vmem>>, vector<1x1x8xf32>
    %111 = vector.shape_cast %110 : vector<1x1x8xf32> to vector<1x8xf32>
    %112 = vector.broadcast %111 : vector<1x8xf32> to vector<16x8xf32>
    %113 = arith.addf %109, %112 : vector<16x8xf32>
    %c2_75 = arith.constant 2 : index
    %c0_76 = arith.constant 0 : index
    %c0_77 = arith.constant 0 : index
    %114 = vector.load %arg6[%c2_75, %c0_76, %c0_77] : memref<4x32x8xf32, #tpu.memory_space<vmem>>, vector<1x32x8xf32>
    %115 = vector.shape_cast %114 : vector<1x32x8xf32> to vector<32x8xf32>
    %cst_78 = arith.constant dense<0.000000e+00> : vector<16x8xf32>
    %116 = tpu.matmul %26, %115, %cst_78 {dimension_numbers = #tpu.dot_dimension_numbers<[1], [0], [0], [1], [0, 0, 1, 1], [], []>} : vector<16x32xf32>, vector<32x8xf32>, vector<16x8xf32> -> vector<16x8xf32>
    %c2_79 = arith.constant 2 : index
    %c0_80 = arith.constant 0 : index
    %c0_81 = arith.constant 0 : index
    %117 = vector.load %arg9[%c2_79, %c0_80, %c0_81] : memref<4x1x8xf32, #tpu.memory_space<vmem>>, vector<1x1x8xf32>
    %118 = vector.shape_cast %117 : vector<1x1x8xf32> to vector<1x8xf32>
    %119 = vector.broadcast %118 : vector<1x8xf32> to vector<16x8xf32>
    %120 = arith.addf %116, %119 : vector<16x8xf32>
    %c2_82 = arith.constant 2 : index
    %c0_83 = arith.constant 0 : index
    %c0_84 = arith.constant 0 : index
    %121 = vector.load %arg7[%c2_82, %c0_83, %c0_84] : memref<4x32x8xf32, #tpu.memory_space<vmem>>, vector<1x32x8xf32>
    %122 = vector.shape_cast %121 : vector<1x32x8xf32> to vector<32x8xf32>
    %cst_85 = arith.constant dense<0.000000e+00> : vector<16x8xf32>
    %123 = tpu.matmul %26, %122, %cst_85 {dimension_numbers = #tpu.dot_dimension_numbers<[1], [0], [0], [1], [0, 0, 1, 1], [], []>} : vector<16x32xf32>, vector<32x8xf32>, vector<16x8xf32> -> vector<16x8xf32>
    %c2_86 = arith.constant 2 : index
    %c0_87 = arith.constant 0 : index
    %c0_88 = arith.constant 0 : index
    %124 = vector.load %arg10[%c2_86, %c0_87, %c0_88] : memref<4x1x8xf32, #tpu.memory_space<vmem>>, vector<1x1x8xf32>
    %125 = vector.shape_cast %124 : vector<1x1x8xf32> to vector<1x8xf32>
    %126 = vector.broadcast %125 : vector<1x8xf32> to vector<16x8xf32>
    %127 = arith.addf %123, %126 : vector<16x8xf32>
    %128 = tpu.transpose %120, [1, 0] : vector<16x8xf32> -> vector<8x16xf32>
    %cst_89 = arith.constant dense<0.000000e+00> : vector<16x16xf32>
    %129 = tpu.matmul %113, %128, %cst_89 {dimension_numbers = #tpu.dot_dimension_numbers<[1], [0], [0], [1], [0, 0, 1, 1], [], []>} : vector<16x8xf32>, vector<8x16xf32>, vector<16x16xf32> -> vector<16x16xf32>
    %130 = arith.addf %129, %27 : vector<16x16xf32>
    %cst_90 = arith.constant dense<0xFF800000> : vector<16xf32>
    %131 = vector.multi_reduction <maximumf>, %130, %cst_90 [1] : vector<16x16xf32> to vector<16xf32>
    %132 = vector.shape_cast %131 : vector<16xf32> to vector<16x1xf32>
    %133 = vector.broadcast %132 : vector<16x1xf32> to vector<16x16xf32>
    %134 = arith.subf %130, %133 : vector<16x16xf32>
    %135 = math.exp %134 : vector<16x16xf32>
    %cst_91 = arith.constant dense<0.000000e+00> : vector<16xf32>
    %136 = vector.multi_reduction <add>, %135, %cst_91 [1] : vector<16x16xf32> to vector<16xf32>
    %137 = vector.shape_cast %136 : vector<16xf32> to vector<16x1xf32>
    %138 = tpu.reciprocal %137 {approx = true} : vector<16x1xf32> -> vector<16x1xf32>
    %139 = vector.broadcast %138 : vector<16x1xf32> to vector<16x16xf32>
    %140 = arith.mulf %135, %139 : vector<16x16xf32>
    %cst_92 = arith.constant dense<0.000000e+00> : vector<16x8xf32>
    %141 = tpu.matmul %140, %127, %cst_92 {dimension_numbers = #tpu.dot_dimension_numbers<[1], [0], [0], [1], [0, 0, 1, 1], [], []>} : vector<16x16xf32>, vector<16x8xf32>, vector<16x8xf32> -> vector<16x8xf32>
    %c2_93 = arith.constant 2 : index
    %c0_94 = arith.constant 0 : index
    %c0_95 = arith.constant 0 : index
    %142 = vector.load %arg11[%c2_93, %c0_94, %c0_95] : memref<4x8x32xf32, #tpu.memory_space<vmem>>, vector<1x8x32xf32>
    %143 = vector.shape_cast %142 : vector<1x8x32xf32> to vector<8x32xf32>
    %cst_96 = arith.constant dense<0.000000e+00> : vector<16x32xf32>
    %144 = tpu.matmul %141, %143, %cst_96 {dimension_numbers = #tpu.dot_dimension_numbers<[1], [0], [0], [1], [0, 0, 1, 1], [], []>} : vector<16x8xf32>, vector<8x32xf32>, vector<16x32xf32> -> vector<16x32xf32>
    %145 = arith.addf %106, %144 : vector<16x32xf32>
    %c3 = arith.constant 3 : index
    %c0_97 = arith.constant 0 : index
    %c0_98 = arith.constant 0 : index
    %146 = vector.load %arg5[%c3, %c0_97, %c0_98] : memref<4x32x8xf32, #tpu.memory_space<vmem>>, vector<1x32x8xf32>
    %147 = vector.shape_cast %146 : vector<1x32x8xf32> to vector<32x8xf32>
    %cst_99 = arith.constant dense<0.000000e+00> : vector<16x8xf32>
    %148 = tpu.matmul %26, %147, %cst_99 {dimension_numbers = #tpu.dot_dimension_numbers<[1], [0], [0], [1], [0, 0, 1, 1], [], []>} : vector<16x32xf32>, vector<32x8xf32>, vector<16x8xf32> -> vector<16x8xf32>
    %c3_100 = arith.constant 3 : index
    %c0_101 = arith.constant 0 : index
    %c0_102 = arith.constant 0 : index
    %149 = vector.load %arg8[%c3_100, %c0_101, %c0_102] : memref<4x1x8xf32, #tpu.memory_space<vmem>>, vector<1x1x8xf32>
    %150 = vector.shape_cast %149 : vector<1x1x8xf32> to vector<1x8xf32>
    %151 = vector.broadcast %150 : vector<1x8xf32> to vector<16x8xf32>
    %152 = arith.addf %148, %151 : vector<16x8xf32>
    %c3_103 = arith.constant 3 : index
    %c0_104 = arith.constant 0 : index
    %c0_105 = arith.constant 0 : index
    %153 = vector.load %arg6[%c3_103, %c0_104, %c0_105] : memref<4x32x8xf32, #tpu.memory_space<vmem>>, vector<1x32x8xf32>
    %154 = vector.shape_cast %153 : vector<1x32x8xf32> to vector<32x8xf32>
    %cst_106 = arith.constant dense<0.000000e+00> : vector<16x8xf32>
    %155 = tpu.matmul %26, %154, %cst_106 {dimension_numbers = #tpu.dot_dimension_numbers<[1], [0], [0], [1], [0, 0, 1, 1], [], []>} : vector<16x32xf32>, vector<32x8xf32>, vector<16x8xf32> -> vector<16x8xf32>
    %c3_107 = arith.constant 3 : index
    %c0_108 = arith.constant 0 : index
    %c0_109 = arith.constant 0 : index
    %156 = vector.load %arg9[%c3_107, %c0_108, %c0_109] : memref<4x1x8xf32, #tpu.memory_space<vmem>>, vector<1x1x8xf32>
    %157 = vector.shape_cast %156 : vector<1x1x8xf32> to vector<1x8xf32>
    %158 = vector.broadcast %157 : vector<1x8xf32> to vector<16x8xf32>
    %159 = arith.addf %155, %158 : vector<16x8xf32>
    %c3_110 = arith.constant 3 : index
    %c0_111 = arith.constant 0 : index
    %c0_112 = arith.constant 0 : index
    %160 = vector.load %arg7[%c3_110, %c0_111, %c0_112] : memref<4x32x8xf32, #tpu.memory_space<vmem>>, vector<1x32x8xf32>
    %161 = vector.shape_cast %160 : vector<1x32x8xf32> to vector<32x8xf32>
    %cst_113 = arith.constant dense<0.000000e+00> : vector<16x8xf32>
    %162 = tpu.matmul %26, %161, %cst_113 {dimension_numbers = #tpu.dot_dimension_numbers<[1], [0], [0], [1], [0, 0, 1, 1], [], []>} : vector<16x32xf32>, vector<32x8xf32>, vector<16x8xf32> -> vector<16x8xf32>
    %c3_114 = arith.constant 3 : index
    %c0_115 = arith.constant 0 : index
    %c0_116 = arith.constant 0 : index
    %163 = vector.load %arg10[%c3_114, %c0_115, %c0_116] : memref<4x1x8xf32, #tpu.memory_space<vmem>>, vector<1x1x8xf32>
    %164 = vector.shape_cast %163 : vector<1x1x8xf32> to vector<1x8xf32>
    %165 = vector.broadcast %164 : vector<1x8xf32> to vector<16x8xf32>
    %166 = arith.addf %162, %165 : vector<16x8xf32>
    %167 = tpu.transpose %159, [1, 0] : vector<16x8xf32> -> vector<8x16xf32>
    %cst_117 = arith.constant dense<0.000000e+00> : vector<16x16xf32>
    %168 = tpu.matmul %152, %167, %cst_117 {dimension_numbers = #tpu.dot_dimension_numbers<[1], [0], [0], [1], [0, 0, 1, 1], [], []>} : vector<16x8xf32>, vector<8x16xf32>, vector<16x16xf32> -> vector<16x16xf32>
    %169 = arith.addf %168, %27 : vector<16x16xf32>
    %cst_118 = arith.constant dense<0xFF800000> : vector<16xf32>
    %170 = vector.multi_reduction <maximumf>, %169, %cst_118 [1] : vector<16x16xf32> to vector<16xf32>
    %171 = vector.shape_cast %170 : vector<16xf32> to vector<16x1xf32>
    %172 = vector.broadcast %171 : vector<16x1xf32> to vector<16x16xf32>
    %173 = arith.subf %169, %172 : vector<16x16xf32>
    %174 = math.exp %173 : vector<16x16xf32>
    %cst_119 = arith.constant dense<0.000000e+00> : vector<16xf32>
    %175 = vector.multi_reduction <add>, %174, %cst_119 [1] : vector<16x16xf32> to vector<16xf32>
    %176 = vector.shape_cast %175 : vector<16xf32> to vector<16x1xf32>
    %177 = tpu.reciprocal %176 {approx = true} : vector<16x1xf32> -> vector<16x1xf32>
    %178 = vector.broadcast %177 : vector<16x1xf32> to vector<16x16xf32>
    %179 = arith.mulf %174, %178 : vector<16x16xf32>
    %cst_120 = arith.constant dense<0.000000e+00> : vector<16x8xf32>
    %180 = tpu.matmul %179, %166, %cst_120 {dimension_numbers = #tpu.dot_dimension_numbers<[1], [0], [0], [1], [0, 0, 1, 1], [], []>} : vector<16x16xf32>, vector<16x8xf32>, vector<16x8xf32> -> vector<16x8xf32>
    %c3_121 = arith.constant 3 : index
    %c0_122 = arith.constant 0 : index
    %c0_123 = arith.constant 0 : index
    %181 = vector.load %arg11[%c3_121, %c0_122, %c0_123] : memref<4x8x32xf32, #tpu.memory_space<vmem>>, vector<1x8x32xf32>
    %182 = vector.shape_cast %181 : vector<1x8x32xf32> to vector<8x32xf32>
    %cst_124 = arith.constant dense<0.000000e+00> : vector<16x32xf32>
    %183 = tpu.matmul %180, %182, %cst_124 {dimension_numbers = #tpu.dot_dimension_numbers<[1], [0], [0], [1], [0, 0, 1, 1], [], []>} : vector<16x8xf32>, vector<8x32xf32>, vector<16x32xf32> -> vector<16x32xf32>
    %184 = arith.addf %145, %183 : vector<16x32xf32>
    %185 = arith.addf %0, %184 : vector<16x32xf32>
    %c0_125 = arith.constant 0 : index
    %c0_126 = arith.constant 0 : index
    %186 = vector.load %arg12[%c0_125, %c0_126] : memref<1x32xf32, #tpu.memory_space<vmem>>, vector<1x32xf32>
    %187 = vector.broadcast %186 : vector<1x32xf32> to vector<16x32xf32>
    %188 = arith.addf %185, %187 : vector<16x32xf32>
    %c0_127 = arith.constant 0 : index
    %c0_128 = arith.constant 0 : index
    %189 = vector.load %arg13[%c0_127, %c0_128] : memref<1x32xf32, #tpu.memory_space<vmem>>, vector<1x32xf32>
    %c0_129 = arith.constant 0 : index
    %c0_130 = arith.constant 0 : index
    %190 = vector.load %arg14[%c0_129, %c0_130] : memref<1x32xf32, #tpu.memory_space<vmem>>, vector<1x32xf32>
    %cst_131 = arith.constant dense<0.000000e+00> : vector<16xf32>
    %191 = vector.multi_reduction <add>, %188, %cst_131 [1] : vector<16x32xf32> to vector<16xf32>
    %192 = vector.shape_cast %191 : vector<16xf32> to vector<16x1xf32>
    %cst_132 = arith.constant 3.200000e+01 : f32
    %193 = vector.broadcast %cst_132 : f32 to vector<16x1xf32>
    %194 = arith.divf %192, %193 : vector<16x1xf32>
    %195 = vector.broadcast %194 : vector<16x1xf32> to vector<16x32xf32>
    %196 = arith.subf %188, %195 : vector<16x32xf32>
    %197 = vector.broadcast %194 : vector<16x1xf32> to vector<16x32xf32>
    %198 = arith.subf %188, %197 : vector<16x32xf32>
    %199 = arith.mulf %196, %198 : vector<16x32xf32>
    %cst_133 = arith.constant dense<0.000000e+00> : vector<16xf32>
    %200 = vector.multi_reduction <add>, %199, %cst_133 [1] : vector<16x32xf32> to vector<16xf32>
    %201 = vector.shape_cast %200 : vector<16xf32> to vector<16x1xf32>
    %cst_134 = arith.constant 3.200000e+01 : f32
    %202 = vector.broadcast %cst_134 : f32 to vector<16x1xf32>
    %203 = arith.divf %201, %202 : vector<16x1xf32>
    %204 = vector.broadcast %194 : vector<16x1xf32> to vector<16x32xf32>
    %205 = arith.subf %188, %204 : vector<16x32xf32>
    %cst_135 = arith.constant 9.99999974E-6 : f32
    %206 = vector.broadcast %cst_135 : f32 to vector<16x1xf32>
    %207 = arith.addf %203, %206 : vector<16x1xf32>
    %208 = math.rsqrt %207 : vector<16x1xf32>
    %209 = vector.broadcast %208 : vector<16x1xf32> to vector<16x32xf32>
    %210 = arith.mulf %205, %209 : vector<16x32xf32>
    %211 = vector.broadcast %189 : vector<1x32xf32> to vector<16x32xf32>
    %212 = arith.mulf %210, %211 : vector<16x32xf32>
    %213 = vector.broadcast %190 : vector<1x32xf32> to vector<16x32xf32>
    %214 = arith.addf %212, %213 : vector<16x32xf32>
    %c0_136 = arith.constant 0 : index
    %c0_137 = arith.constant 0 : index
    %215 = vector.load %arg15[%c0_136, %c0_137] : memref<32x128xf32, #tpu.memory_space<vmem>>, vector<32x128xf32>
    %cst_138 = arith.constant dense<0.000000e+00> : vector<16x128xf32>
    %216 = tpu.matmul %214, %215, %cst_138 {dimension_numbers = #tpu.dot_dimension_numbers<[1], [0], [0], [1], [0, 0, 1, 1], [], []>} : vector<16x32xf32>, vector<32x128xf32>, vector<16x128xf32> -> vector<16x128xf32>
    %c0_139 = arith.constant 0 : index
    %c0_140 = arith.constant 0 : index
    %217 = vector.load %arg16[%c0_139, %c0_140] : memref<1x128xf32, #tpu.memory_space<vmem>>, vector<1x128xf32>
    %218 = vector.broadcast %217 : vector<1x128xf32> to vector<16x128xf32>
    %219 = arith.addf %216, %218 : vector<16x128xf32>
    %cst_141 = arith.constant 5.000000e-01 : f32
    %220 = vector.broadcast %cst_141 : f32 to vector<16x128xf32>
    %221 = arith.mulf %220, %219 : vector<16x128xf32>
    %cst_142 = arith.constant 4.471500e-02 : f32
    %222 = vector.broadcast %cst_142 : f32 to vector<16x128xf32>
    %223 = arith.mulf %222, %219 : vector<16x128xf32>
    %224 = arith.mulf %223, %219 : vector<16x128xf32>
    %225 = arith.mulf %224, %219 : vector<16x128xf32>
    %226 = arith.addf %219, %225 : vector<16x128xf32>
    %cst_143 = arith.constant 0.797884583 : f32
    %227 = vector.broadcast %cst_143 : f32 to vector<16x128xf32>
    %228 = arith.mulf %227, %226 : vector<16x128xf32>
    %229 = math.tanh %228 : vector<16x128xf32>
    %cst_144 = arith.constant 1.000000e+00 : f32
    %230 = vector.broadcast %cst_144 : f32 to vector<16x128xf32>
    %231 = arith.addf %230, %229 : vector<16x128xf32>
    %232 = arith.mulf %221, %231 : vector<16x128xf32>
    %c0_145 = arith.constant 0 : index
    %c0_146 = arith.constant 0 : index
    %233 = vector.load %arg17[%c0_145, %c0_146] : memref<128x32xf32, #tpu.memory_space<vmem>>, vector<128x32xf32>
    %cst_147 = arith.constant dense<0.000000e+00> : vector<16x32xf32>
    %234 = tpu.matmul %232, %233, %cst_147 {dimension_numbers = #tpu.dot_dimension_numbers<[1], [0], [0], [1], [0, 0, 1, 1], [], []>} : vector<16x128xf32>, vector<128x32xf32>, vector<16x32xf32> -> vector<16x32xf32>
    %c0_148 = arith.constant 0 : index
    %c0_149 = arith.constant 0 : index
    %235 = vector.load %arg18[%c0_148, %c0_149] : memref<1x32xf32, #tpu.memory_space<vmem>>, vector<1x32xf32>
    %236 = vector.broadcast %235 : vector<1x32xf32> to vector<16x32xf32>
    %237 = arith.addf %234, %236 : vector<16x32xf32>
    %238 = arith.addf %188, %237 : vector<16x32xf32>
    %c0_150 = arith.constant 0 : index
    %c0_151 = arith.constant 0 : index
    %239 = vector.load %arg19[%c0_150, %c0_151] : memref<16x32xf32, #tpu.memory_space<vmem>>, vector<16x32xf32>
    tpu.vector_store %arg19[%c0_150, %c0_151], %238 {strides = array<i32>} : memref<16x32xf32, #tpu.memory_space<vmem>>, vector<16x32xf32>,
    return
  }
  func.func @transform_0(%arg0: i32) -> (i32, i32) {
    %c0_i32 = arith.constant 0 : i32
    %c0_i32_0 = arith.constant 0 : i32
    %c0_i32_1 = arith.constant 0 : i32
    return %c0_i32, %c0_i32_0 : i32, i32
  }
  func.func @transform_1(%arg0: i32) -> (i32, i32) {
    %c0_i32 = arith.constant 0 : i32
    %c0_i32_0 = arith.constant 0 : i32
    %c0_i32_1 = arith.constant 0 : i32
    return %c0_i32, %c0_i32_0 : i32, i32
  }
  func.func @transform_2(%arg0: i32) -> (i32, i32) {
    %c0_i32 = arith.constant 0 : i32
    %c0_i32_0 = arith.constant 0 : i32
    %c0_i32_1 = arith.constant 0 : i32
    return %c0_i32, %c0_i32_0 : i32, i32
  }
  func.func @transform_3(%arg0: i32) -> (i32, i32) {
    %c0_i32 = arith.constant 0 : i32
    %c0_i32_0 = arith.constant 0 : i32
    %c0_i32_1 = arith.constant 0 : i32
    return %c0_i32, %c0_i32_0 : i32, i32
  }
  func.func @transform_4(%arg0: i32) -> (i32, i32, i32) {
    %c0_i32 = arith.constant 0 : i32
    %c0_i32_0 = arith.constant 0 : i32
    %c0_i32_1 = arith.constant 0 : i32
    %c0_i32_2 = arith.constant 0 : i32
    return %c0_i32, %c0_i32_0, %c0_i32_1 : i32, i32, i32
  }
  func.func @transform_5(%arg0: i32) -> (i32, i32, i32) {
    %c0_i32 = arith.constant 0 : i32
    %c0_i32_0 = arith.constant 0 : i32
    %c0_i32_1 = arith.constant 0 : i32
    %c0_i32_2 = arith.constant 0 : i32
    return %c0_i32, %c0_i32_0, %c0_i32_1 : i32, i32, i32
  }
  func.func @transform_6(%arg0: i32) -> (i32, i32, i32) {
    %c0_i32 = arith.constant 0 : i32
    %c0_i32_0 = arith.constant 0 : i32
    %c0_i32_1 = arith.constant 0 : i32
    %c0_i32_2 = arith.constant 0 : i32
    return %c0_i32, %c0_i32_0, %c0_i32_1 : i32, i32, i32
  }
  func.func @transform_7(%arg0: i32) -> (i32, i32, i32) {
    %c0_i32 = arith.constant 0 : i32
    %c0_i32_0 = arith.constant 0 : i32
    %c0_i32_1 = arith.constant 0 : i32
    %c0_i32_2 = arith.constant 0 : i32
    return %c0_i32, %c0_i32_0, %c0_i32_1 : i32, i32, i32
  }
  func.func @transform_8(%arg0: i32) -> (i32, i32, i32) {
    %c0_i32 = arith.constant 0 : i32
    %c0_i32_0 = arith.constant 0 : i32
    %c0_i32_1 = arith.constant 0 : i32
    %c0_i32_2 = arith.constant 0 : i32
    return %c0_i32, %c0_i32_0, %c0_i32_1 : i32, i32, i32
  }
  func.func @transform_9(%arg0: i32) -> (i32, i32, i32) {
    %c0_i32 = arith.constant 0 : i32
    %c0_i32_0 = arith.constant 0 : i32
    %c0_i32_1 = arith.constant 0 : i32
    %c0_i32_2 = arith.constant 0 : i32
    return %c0_i32, %c0_i32_0, %c0_i32_1 : i32, i32, i32
  }
  func.func @transform_10(%arg0: i32) -> (i32, i32, i32) {
    %c0_i32 = arith.constant 0 : i32
    %c0_i32_0 = arith.constant 0 : i32
    %c0_i32_1 = arith.constant 0 : i32
    %c0_i32_2 = arith.constant 0 : i32
    return %c0_i32, %c0_i32_0, %c0_i32_1 : i32, i32, i32
  }
  func.func @transform_11(%arg0: i32) -> (i32, i32) {
    %c0_i32 = arith.constant 0 : i32
    %c0_i32_0 = arith.constant 0 : i32
    %c0_i32_1 = arith.constant 0 : i32
    return %c0_i32, %c0_i32_0 : i32, i32
  }
  func.func @transform_12(%arg0: i32) -> (i32, i32) {
    %c0_i32 = arith.constant 0 : i32
    %c0_i32_0 = arith.constant 0 : i32
    %c0_i32_1 = arith.constant 0 : i32
    return %c0_i32, %c0_i32_0 : i32, i32
  }
  func.func @transform_13(%arg0: i32) -> (i32, i32) {
    %c0_i32 = arith.constant 0 : i32
    %c0_i32_0 = arith.constant 0 : i32
    %c0_i32_1 = arith.constant 0 : i32
    return %c0_i32, %c0_i32_0 : i32, i32
  }
  func.func @transform_14(%arg0: i32) -> (i32, i32) {
    %c0_i32 = arith.constant 0 : i32
    %c0_i32_0 = arith.constant 0 : i32
    %c0_i32_1 = arith.constant 0 : i32
    return %c0_i32, %c0_i32_0 : i32, i32
  }
  func.func @transform_15(%arg0: i32) -> (i32, i32) {
    %c0_i32 = arith.constant 0 : i32
    %c0_i32_0 = arith.constant 0 : i32
    %c0_i32_1 = arith.constant 0 : i32
    return %c0_i32, %c0_i32_0 : i32, i32
  }
  func.func @transform_16(%arg0: i32) -> (i32, i32) {
    %c0_i32 = arith.constant 0 : i32
    %c0_i32_0 = arith.constant 0 : i32
    %c0_i32_1 = arith.constant 0 : i32
    return %c0_i32, %c0_i32_0 : i32, i32
  }
  func.func @transform_17(%arg0: i32) -> (i32, i32) {
    %c0_i32 = arith.constant 0 : i32
    %c0_i32_0 = arith.constant 0 : i32
    %c0_i32_1 = arith.constant 0 : i32
    return %c0_i32, %c0_i32_0 : i32, i32
  }
  func.func @transform_18(%arg0: i32) -> (i32, i32) {
    %c0_i32 = arith.constant 0 : i32
    %c0_i32_0 = arith.constant 0 : i32
    %c0_i32_1 = arith.constant 0 : i32
    return %c0_i32, %c0_i32_0 : i32, i32
  }
}

</mosaic_0001>

<llo_original>
// kernel: tpu_custom_call.1
$region0: #{tpu_custom_call.1}
  #allocation0 [shape = 'u32[]', space=smem, size = 0x4, offset = 0x4, fixed_abs, tag = 'smem constant byte address 0x4 - core index']
  #allocation1 [shape = 'u32[72,128]{1,0:T(1,128)}', space=vmem, size = 0x9000, scoped, tag = 'internal scratch']
  %s0 = inlined_call_operand.vmem [shape: f32[16,32], index: 0, kind: input, shape index: {}]
  %s1 = inlined_call_operand.vmem [shape: f32[16,16], index: 1, kind: input, shape index: {}]
  %s2 = inlined_call_operand.vmem [shape: f32[1,32], index: 2, kind: input, shape index: {}]
  %s3 = inlined_call_operand.vmem [shape: f32[1,32], index: 3, kind: input, shape index: {}]
  %s4 = inlined_call_operand.vmem [shape: f32[4,32,8], index: 4, kind: input, shape index: {}]
  %s5 = inlined_call_operand.vmem [shape: f32[4,32,8], index: 5, kind: input, shape index: {}]
  %s6 = inlined_call_operand.vmem [shape: f32[4,32,8], index: 6, kind: input, shape index: {}]
  %s7 = inlined_call_operand.vmem [shape: f32[4,1,8], index: 7, kind: input, shape index: {}]
  %s8 = inlined_call_operand.vmem [shape: f32[4,1,8], index: 8, kind: input, shape index: {}]
  %s9 = inlined_call_operand.vmem [shape: f32[4,1,8], index: 9, kind: input, shape index: {}]
  %s10 = inlined_call_operand.vmem [shape: f32[4,8,32], index: 10, kind: input, shape index: {}]
  %s11 = inlined_call_operand.vmem [shape: f32[1,32], index: 11, kind: input, shape index: {}]
  %s12 = inlined_call_operand.vmem [shape: f32[1,32], index: 12, kind: input, shape index: {}]
  %s13 = inlined_call_operand.vmem [shape: f32[1,32], index: 13, kind: input, shape index: {}]
  %s14 = inlined_call_operand.vmem [shape: f32[32,128], index: 14, kind: input, shape index: {}]
  %s15 = inlined_call_operand.vmem [shape: f32[1,128], index: 15, kind: input, shape index: {}]
  %s16 = inlined_call_operand.vmem [shape: f32[128,32], index: 16, kind: input, shape index: {}]
  %s17 = inlined_call_operand.vmem [shape: f32[1,32], index: 17, kind: input, shape index: {}]
  %s18 = inlined_call_operand.hbm [shape: f32[16,32], index: 18, kind: output, shape index: {}]
  %s19 = sld [smem:[#allocation0]]
  $region82: #{tpu_custom_call.1} parent=0
    _
  %s21 = ssub.s32 1, %s19
  %s22 = scalar_select 0, %s21, %s19
  $region1: #{tpu_custom_call.1} parent=0
    #allocation2 [shape = 'u8[8192]{0}', space=vmem, size = 0x2000, scoped, tag = 'output window, operand 0, single buffered']
    #allocation3 [shape = 's32[1]{0}', space=sflag, size = 0x4, scoped, tag = 'scoped memory for tpu_custom_call.1']
    %23 = vsyncpa [#allocation3], 0
    // Predicated region
    $region2: #{tpu_custom_call.1} parent=1 // pred_check
      _
    $region3: #{tpu_custom_call.1} parent=1 // pred_check_branch
      %25 = sbr.rel (0) target = $region5
    $region4: #{tpu_custom_call.1} parent=1 // pred_region
      _
    $region5: #{tpu_custom_call.1} parent=1 // pred_fallthru
      _
    // Predicated region
    $region6: #{tpu_custom_call.1} parent=1 // pred_check
      _
    $region7: #{tpu_custom_call.1} parent=1 // pred_check_branch
      %27 = sbr.rel (0) target = $region9
    $region8: #{tpu_custom_call.1} parent=1 // pred_region
      _
    $region9: #{tpu_custom_call.1} parent=1 // pred_fallthru
      _
    // Predicated region
    $region10: #{tpu_custom_call.1} parent=1 // pred_check
      _
    $region11: #{tpu_custom_call.1} parent=1 // pred_check_branch
      %29 = sbr.rel (0) target = $region13
    $region12: #{tpu_custom_call.1} parent=1 // pred_region
      _
    $region13: #{tpu_custom_call.1} parent=1 // pred_fallthru
      _
    // Predicated region
    $region14: #{tpu_custom_call.1} parent=1 // pred_check
      _
    $region15: #{tpu_custom_call.1} parent=1 // pred_check_branch
      %31 = sbr.rel (0) target = $region17
    $region16: #{tpu_custom_call.1} parent=1 // pred_region
      _
    $region17: #{tpu_custom_call.1} parent=1 // pred_fallthru
      _
    // Predicated region
    $region18: #{tpu_custom_call.1} parent=1 // pred_check
      _
    $region19: #{tpu_custom_call.1} parent=1 // pred_check_branch
      %33 = sbr.rel (0) target = $region21
    $region20: #{tpu_custom_call.1} parent=1 // pred_region
      _
    $region21: #{tpu_custom_call.1} parent=1 // pred_fallthru
      _
    // Predicated region
    $region22: #{tpu_custom_call.1} parent=1 // pred_check
      _
    $region23: #{tpu_custom_call.1} parent=1 // pred_check_branch
      %35 = sbr.rel (0) target = $region25
    $region24: #{tpu_custom_call.1} parent=1 // pred_region
      _
    $region25: #{tpu_custom_call.1} parent=1 // pred_fallthru
      _
    // Predicated region
    $region26: #{tpu_custom_call.1} parent=1 // pred_check
      _
    $region27: #{tpu_custom_call.1} parent=1 // pred_check_branch
      %37 = sbr.rel (0) target = $region29
    $region28: #{tpu_custom_call.1} parent=1 // pred_region
      _
    $region29: #{tpu_custom_call.1} parent=1 // pred_fallthru
      _
    // Predicated region
    $region30: #{tpu_custom_call.1} parent=1 // pred_check
      _
    $region31: #{tpu_custom_call.1} parent=1 // pred_check_branch
      %39 = sbr.rel (0) target = $region33
    $region32: #{tpu_custom_call.1} parent=1 // pred_region
      _
    $region33: #{tpu_custom_call.1} parent=1 // pred_fallthru
      _
    // Predicated region
    $region34: #{tpu_custom_call.1} parent=1 // pred_check
      _
    $region35: #{tpu_custom_call.1} parent=1 // pred_check_branch
      %41 = sbr.rel (0) target = $region37
    $region36: #{tpu_custom_call.1} parent=1 // pred_region
      _
    $region37: #{tpu_custom_call.1} parent=1 // pred_fallthru
      _
    // Predicated region
    $region38: #{tpu_custom_call.1} parent=1 // pred_check
      _
    $region39: #{tpu_custom_call.1} parent=1 // pred_check_branch
      %43 = sbr.rel (0) target = $region41
    $region40: #{tpu_custom_call.1} parent=1 // pred_region
      _
    $region41: #{tpu_custom_call.1} parent=1 // pred_fallthru
      _
    // Predicated region
    $region42: #{tpu_custom_call.1} parent=1 // pred_check
      _
    $region43: #{tpu_custom_call.1} parent=1 // pred_check_branch
      %45 = sbr.rel (0) target = $region45
    $region44: #{tpu_custom_call.1} parent=1 // pred_region
      _
    $region45: #{tpu_custom_call.1} parent=1 // pred_fallthru
      _
    // Predicated region
    $region46: #{tpu_custom_call.1} parent=1 // pred_check
      _
    $region47: #{tpu_custom_call.1} parent=1 // pred_check_branch
      %47 = sbr.rel (0) target = $region49
    $region48: #{tpu_custom_call.1} parent=1 // pred_region
      _
    $region49: #{tpu_custom_call.1} parent=1 // pred_fallthru
      _
    // Predicated region
    $region50: #{tpu_custom_call.1} parent=1 // pred_check
      _
    $region51: #{tpu_custom_call.1} parent=1 // pred_check_branch
      %49 = sbr.rel (0) target = $region53
    $region52: #{tpu_custom_call.1} parent=1 // pred_region
      _
    $region53: #{tpu_custom_call.1} parent=1 // pred_fallthru
      _
    // Predicated region
    $region54: #{tpu_custom_call.1} parent=1 // pred_check
      _
    $region55: #{tpu_custom_call.1} parent=1 // pred_check_branch
      %51 = sbr.rel (0) target = $region57
    $region56: #{tpu_custom_call.1} parent=1 // pred_region
      _
    $region57: #{tpu_custom_call.1} parent=1 // pred_fallthru
      _
    // Predicated region
    $region58: #{tpu_custom_call.1} parent=1 // pred_check
      _
    $region59: #{tpu_custom_call.1} parent=1 // pred_check_branch
      %53 = sbr.rel (0) target = $region61
    $region60: #{tpu_custom_call.1} parent=1 // pred_region
      _
    $region61: #{tpu_custom_call.1} parent=1 // pred_fallthru
      _
    // Predicated region
    $region62: #{tpu_custom_call.1} parent=1 // pred_check
      _
    $region63: #{tpu_custom_call.1} parent=1 // pred_check_branch
      %55 = sbr.rel (0) target = $region65
    $region64: #{tpu_custom_call.1} parent=1 // pred_region
      _
    $region65: #{tpu_custom_call.1} parent=1 // pred_fallthru
      _
    // Predicated region
    $region66: #{tpu_custom_call.1} parent=1 // pred_check
      _
    $region67: #{tpu_custom_call.1} parent=1 // pred_check_branch
      %57 = sbr.rel (0) target = $region69
    $region68: #{tpu_custom_call.1} parent=1 // pred_region
      _
    $region69: #{tpu_custom_call.1} parent=1 // pred_fallthru
      _
    // Predicated region
    $region70: #{tpu_custom_call.1} parent=1 // pred_check
      _
    $region71: #{tpu_custom_call.1} parent=1 // pred_check_branch
      %59 = sbr.rel (0) target = $region73
    $region72: #{tpu_custom_call.1} parent=1 // pred_region
      _
    $region73: #{tpu_custom_call.1} parent=1 // pred_fallthru
      _
    %v60 = vld [vmem:[%s0] sm:$0xff]
    %v61 = vld [vmem:[%s0 + $0x8] sm:$0xff]
    %v62 = vld [vmem:[%s2] sm:$0x1]
    %v63 = vld [vmem:[%s3] sm:$0x1]
    %vm64 = vcmask 261120
    %v65 = vsel %vm64, %v60, 0.0
    %66 = vadd.xlane.f32.xlu0 %v65
    %v67 = vpop.xlane.xlu0 %66
    %v68 = vsel %vm64, %v61, 0.0
    %69 = vadd.xlane.f32.xlu0 %v68
    %v70 = vpop.xlane.xlu0 %69
    %v71 = vrcp.pop 32.0
    %v72 = vmul.f32 32.0, %v71
    %v73 = vsub.f32 1.0, %v72
    %v74 = vmul.f32 %v71, %v73
    %v75 = vadd.f32 %v71, %v74
    %vm76 = vweird.f32 %v71
    %v77 = vsel %vm76, %v71, %v75
    %v78 = vmul.f32 %v67, %v77
    %v79 = vmul.f32 %v70, %v77
    %v80 = vsub.f32 %v60, %v78
    %v81 = vsub.f32 %v61, %v79
    %v82 = vmul.f32 %v80, %v80
    %v83 = vmul.f32 %v81, %v81
    %v84 = vsel %vm64, %v82, 0.0
    %85 = vadd.xlane.f32.xlu0 %v84
    %v86 = vpop.xlane.xlu0 %85
    %v87 = vsel %vm64, %v83, 0.0
    %88 = vadd.xlane.f32.xlu0 %v87
    %v89 = vpop.xlane.xlu0 %88
    %v90 = vmul.f32 %v86, %v77
    %v91 = vmul.f32 %v89, %v77
    %v92 = vadd.f32 %v90, 1e-05
    %v93 = vadd.f32 %v91, 1e-05
    %v94 = vrsqrt.pop %v92
    %v95 = vmul.f32 %v94, %v92
    %v96 = vmul.f32 %v95, %v94
    %v97 = vmul.f32 0.5, %v96
    %v98 = vsub.f32 1.5, %v97
    %v99 = vmul.f32 %v94, %v98
    %vm100 = vweird.f32 %v92
    %vm101 = vweird.f32 %v94
    %vm102 = vmor %vm100, %vm101
    %v103 = vsel %vm102, %v94, %v99
    %v104 = vrsqrt.pop %v93
    %v105 = vmul.f32 %v104, %v93
    %v106 = vmul.f32 %v105, %v104
    %v107 = vmul.f32 0.5, %v106
    %v108 = vsub.f32 1.5, %v107
    %v109 = vmul.f32 %v104, %v108
    %vm110 = vweird.f32 %v93
    %vm111 = vweird.f32 %v104
    %vm112 = vmor %vm110, %vm111
    %v113 = vsel %vm112, %v104, %v109
    %v114 = vmul.f32 %v80, %v103
    %v115 = vmul.f32 %v81, %v113
    %v117 = vperm.slane %v62, 0
    %v119 = vmul.f32 %v114, %v117
    %v120 = vmul.f32 %v115, %v117
    %v122 = vperm.slane %v63, 0
    %v124 = vadd.f32 %v119, %v122
    %v125 = vadd.f32 %v120, %v122
    %v126 = vld [vmem:[%s1] sm:$0xff]
    %v127 = vld [vmem:[%s1 + $0x8] sm:$0xff]
    %v128 = vld [vmem:[%s4] sm:$0xff]
    %v129 = vld [vmem:[%s4 + $0x8] sm:$0xff]
    %v130 = vld [vmem:[%s4 + $0x10] sm:$0xff]
    %v131 = vld [vmem:[%s4 + $0x18] sm:$0xff]
    %v132 = vld [vmem:[%s7] sm:$0x1]
    %v134 = vperm.slane %v132, 0
    %v137 = vsel %vm64, %v124, 0
    %v140 = vsel %vm64, %v125, 0
    %142 = vmatpush.msra.mxu0 0.0
    %143 = vmatpush.msra.mxu0 0.0
    %144 = vmatpush.msra.mxu0 0.0
    %145 = vmatpush.msra.mxu0 0.0
    %146 = vmatpush.msra.mxu0 0.0
    %147 = vmatpush.msra.mxu0 0.0
    %148 = vmatpush.msra.mxu0 0.0
    %149 = vmatpush.msra.mxu0 0.0
    %150 = vmatpush.msra.mxu0 0.0
    %151 = vmatpush.msra.mxu0 0.0
    %152 = vmatpush.msra.mxu0 0.0
    %153 = vmatpush.msra.mxu0 0.0
    %154 = vmatpush.msra.mxu0 %v131
    %155 = vmatpush.msra.mxu0 %v130
    %156 = vmatpush.msra.mxu0 %v129
    %157 = vmatpush.msra.mxu0 %v128
    %158 = vmatmul.f32.gmra.mxu0 %v137
    %v159 = vpop.f32.mrf.mxu0
    %v160 = vadd.f32 %v134, %v159
    %161 = vmatmul.f32.gmra.mxu0 %v140
    %v162 = vpop.f32.mrf.mxu0
    %v163 = vadd.f32 %v134, %v162
    %164 = vdwg.mxu0
    %v165 = vld [vmem:[%s5] sm:$0xff]
    %v166 = vld [vmem:[%s5 + $0x8] sm:$0xff]
    %v167 = vld [vmem:[%s5 + $0x10] sm:$0xff]
    %v168 = vld [vmem:[%s5 + $0x18] sm:$0xff]
    %v169 = vld [vmem:[%s8] sm:$0x1]
    %v171 = vperm.slane %v169, 0
    %173 = vmatpush.msra.mxu0 0.0
    %174 = vmatpush.msra.mxu0 0.0
    %175 = vmatpush.msra.mxu0 0.0
    %176 = vmatpush.msra.mxu0 0.0
    %177 = vmatpush.msra.mxu0 0.0
    %178 = vmatpush.msra.mxu0 0.0
    %179 = vmatpush.msra.mxu0 0.0
    %180 = vmatpush.msra.mxu0 0.0
    %181 = vmatpush.msra.mxu0 0.0
    %182 = vmatpush.msra.mxu0 0.0
    %183 = vmatpush.msra.mxu0 0.0
    %184 = vmatpush.msra.mxu0 0.0
    %185 = vmatpush.msra.mxu0 %v168
    %186 = vmatpush.msra.mxu0 %v167
    %187 = vmatpush.msra.mxu0 %v166
    %188 = vmatpush.msra.mxu0 %v165
    %189 = vmatmul.f32.gmra.mxu0 %v137
    %v190 = vpop.f32.mrf.mxu0
    %v191 = vadd.f32 %v171, %v190
    %192 = vmatmul.f32.gmra.mxu0 %v140
    %v193 = vpop.f32.mrf.mxu0
    %v194 = vadd.f32 %v171, %v193
    %195 = vdwg.mxu0
    %v196 = vld [vmem:[%s6] sm:$0xff]
    %v197 = vld [vmem:[%s6 + $0x8] sm:$0xff]
    %v198 = vld [vmem:[%s6 + $0x10] sm:$0xff]
    %v199 = vld [vmem:[%s6 + $0x18] sm:$0xff]
    %v200 = vld [vmem:[%s9] sm:$0x1]
    %v202 = vperm.slane %v200, 0
    %204 = vmatpush.msra.mxu0 0.0
    %205 = vmatpush.msra.mxu0 0.0
    %206 = vmatpush.msra.mxu0 0.0
    %207 = vmatpush.msra.mxu0 0.0
    %208 = vmatpush.msra.mxu0 0.0
    %209 = vmatpush.msra.mxu0 0.0
    %210 = vmatpush.msra.mxu0 0.0
    %211 = vmatpush.msra.mxu0 0.0
    %212 = vmatpush.msra.mxu0 0.0
    %213 = vmatpush.msra.mxu0 0.0
    %214 = vmatpush.msra.mxu0 0.0
    %215 = vmatpush.msra.mxu0 0.0
    %216 = vmatpush.msra.mxu0 %v199
    %217 = vmatpush.msra.mxu0 %v198
    %218 = vmatpush.msra.mxu0 %v197
    %219 = vmatpush.msra.mxu0 %v196
    %220 = vmatmul.f32.gmra.mxu0 %v137
    %v221 = vpop.f32.mrf.mxu0
    %v222 = vadd.f32 %v202, %v221
    %223 = vmatmul.f32.gmra.mxu0 %v140
    %v224 = vpop.f32.mrf.mxu0
    %v225 = vadd.f32 %v202, %v224
    %226 = vdwg.mxu0
    %vm227 = vcmask 64512
    %v229 = vsel %vm227, %v160, 0
    %v232 = vsel %vm227, %v163, 0
    %v235 = vsel %vm227, %v191, 0
    %v238 = vsel %vm227, %v194, 0
    %240 = vmatpush.xpose.msra.mxu0 0.0
    %241 = vmatpush.xpose.msra.mxu0 0.0
    %242 = vmatpush.xpose.msra.mxu0 0.0
    %243 = vmatpush.xpose.msra.mxu0 0.0
    %244 = vmatpush.xpose.msra.mxu0 0.0
    %245 = vmatpush.xpose.msra.mxu0 0.0
    %246 = vmatpush.xpose.msra.mxu0 0.0
    %247 = vmatpush.xpose.msra.mxu0 0.0
    %248 = vmatpush.xpose.msra.mxu0 0.0
    %249 = vmatpush.xpose.msra.mxu0 0.0
    %250 = vmatpush.xpose.msra.mxu0 0.0
    %251 = vmatpush.xpose.msra.mxu0 0.0
    %252 = vmatpush.xpose.msra.mxu0 0.0
    %253 = vmatpush.xpose.msra.mxu0 0.0
    %254 = vmatpush.xpose.msra.mxu0 %v238
    %255 = vmatpush.xpose.msra.mxu0 %v235
    %256 = vmatmul.f32.gmra.mxu0 %v229
    %v257 = vpop.f32.mrf.mxu0
    %v258 = vadd.f32 %v126, %v257
    %259 = vmatmul.f32.gmra.mxu0 %v232
    %v260 = vpop.f32.mrf.mxu0
    %v261 = vadd.f32 %v127, %v260
    %262 = vdwg.mxu0
    %vm263 = vcmask 130048
    %v264 = vsel %vm263, %v258, -inf
    %265 = vmax.xlane.f32.xlu0 %v264
    %v266 = vpop.xlane.xlu0 %265
    %v267 = vsel %vm263, %v261, -inf
    %268 = vmax.xlane.f32.xlu0 %v267
    %v269 = vpop.xlane.xlu0 %268
    %v270 = vsub.f32 %v258, %v266
    %v271 = vsub.f32 %v261, %v269
    %v272 = vmul.f32 %v270, 1.442695
    %v273 = vpow.pop %v272
    %v274 = vmul.f32 %v271, 1.442695
    %v275 = vpow.pop %v274
    %v276 = vsel %vm263, %v273, 0.0
    %277 = vadd.xlane.f32.xlu0 %v276
    %v278 = vpop.xlane.xlu0 %277
    %v279 = vsel %vm263, %v275, 0.0
    %280 = vadd.xlane.f32.xlu0 %v279
    %v281 = vpop.xlane.xlu0 %280
    %v282 = vrcp.pop %v278
    %v283 = vrcp.pop %v281
    %v284 = vmul.f32 %v273, %v282
    %v285 = vmul.f32 %v275, %v283
    %v287 = vsel %vm263, %v284, 0
    %v290 = vsel %vm263, %v285, 0
    %292 = vmatpush.msra.mxu0 0.0
    %293 = vmatpush.msra.mxu0 0.0
    %294 = vmatpush.msra.mxu0 0.0
    %295 = vmatpush.msra.mxu0 0.0
    %296 = vmatpush.msra.mxu0 0.0
    %297 = vmatpush.msra.mxu0 0.0
    %298 = vmatpush.msra.mxu0 0.0
    %299 = vmatpush.msra.mxu0 0.0
    %300 = vmatpush.msra.mxu0 0.0
    %301 = vmatpush.msra.mxu0 0.0
    %302 = vmatpush.msra.mxu0 0.0
    %303 = vmatpush.msra.mxu0 0.0
    %304 = vmatpush.msra.mxu0 0.0
    %305 = vmatpush.msra.mxu0 0.0
    %306 = vmatpush.msra.mxu0 %v225
    %307 = vmatpush.msra.mxu0 %v222
    %308 = vmatmul.f32.gmra.mxu0 %v287
    %v309 = vpop.f32.mrf.mxu0
    %v310 = vadd.f32 0.0, %v309
    %311 = vmatmul.f32.gmra.mxu0 %v290
    %v312 = vpop.f32.mrf.mxu0
    %v313 = vadd.f32 0.0, %v312
    %314 = vdwg.mxu0
    %v315 = vld [vmem:[%s10] sm:$0xff]
    %s316 = scalar_lea.vmem %s4, 32
    %v317 = vld [vmem:[%s316] sm:$0xff]
    %v318 = vld [vmem:[%s316 + $0x8] sm:$0xff]
    %v319 = vld [vmem:[%s316 + $0x10] sm:$0xff]
    %v320 = vld [vmem:[%s316 + $0x18] sm:$0xff]
    %s321 = scalar_lea.vmem %s7, 1
    %v322 = vld [vmem:[%s321] sm:$0x1]
    %v324 = vperm.slane %v322, 0
    %326 = vmatpush.msra.mxu0 0.0
    %327 = vmatpush.msra.mxu0 0.0
    %328 = vmatpush.msra.mxu0 0.0
    %329 = vmatpush.msra.mxu0 0.0
    %330 = vmatpush.msra.mxu0 0.0
    %331 = vmatpush.msra.mxu0 0.0
    %332 = vmatpush.msra.mxu0 0.0
    %333 = vmatpush.msra.mxu0 0.0
    %334 = vmatpush.msra.mxu0 0.0
    %335 = vmatpush.msra.mxu0 0.0
    %336 = vmatpush.msra.mxu0 0.0
    %337 = vmatpush.msra.mxu0 0.0
    %338 = vmatpush.msra.mxu0 %v320
    %339 = vmatpush.msra.mxu0 %v319
    %340 = vmatpush.msra.mxu0 %v318
    %341 = vmatpush.msra.mxu0 %v317
    %342 = vmatmul.f32.gmra.mxu0 %v137
    %v343 = vpop.f32.mrf.mxu0
    %v344 = vadd.f32 %v324, %v343
    %345 = vmatmul.f32.gmra.mxu0 %v140
    %v346 = vpop.f32.mrf.mxu0
    %v347 = vadd.f32 %v324, %v346
    %348 = vdwg.mxu0
    %s349 = scalar_lea.vmem %s5, 32
    %v350 = vld [vmem:[%s349] sm:$0xff]
    %v351 = vld [vmem:[%s349 + $0x8] sm:$0xff]
    %v352 = vld [vmem:[%s349 + $0x10] sm:$0xff]
    %v353 = vld [vmem:[%s349 + $0x18] sm:$0xff]
    %s354 = scalar_lea.vmem %s8, 1
    %v355 = vld [vmem:[%s354] sm:$0x1]
    %v357 = vperm.slane %v355, 0
    %359 = vmatpush.msra.mxu0 0.0
    %360 = vmatpush.msra.mxu0 0.0
    %361 = vmatpush.msra.mxu0 0.0
    %362 = vmatpush.msra.mxu0 0.0
    %363 = vmatpush.msra.mxu0 0.0
    %364 = vmatpush.msra.mxu0 0.0
    %365 = vmatpush.msra.mxu0 0.0
    %366 = vmatpush.msra.mxu0 0.0
    %367 = vmatpush.msra.mxu0 0.0
    %368 = vmatpush.msra.mxu0 0.0
    %369 = vmatpush.msra.mxu0 0.0
    %370 = vmatpush.msra.mxu0 0.0
    %371 = vmatpush.msra.mxu0 %v353
    %372 = vmatpush.msra.mxu0 %v352
    %373 = vmatpush.msra.mxu0 %v351
    %374 = vmatpush.msra.mxu0 %v350
    %375 = vmatmul.f32.gmra.mxu0 %v137
    %v376 = vpop.f32.mrf.mxu0
    %v377 = vadd.f32 %v357, %v376
    %378 = vmatmul.f32.gmra.mxu0 %v140
    %v379 = vpop.f32.mrf.mxu0
    %v380 = vadd.f32 %v357, %v379
    %381 = vdwg.mxu0
    %s382 = scalar_lea.vmem %s6, 32
    %v383 = vld [vmem:[%s382] sm:$0xff]
    %v384 = vld [vmem:[%s382 + $0x8] sm:$0xff]
    %v385 = vld [vmem:[%s382 + $0x10] sm:$0xff]
    %v386 = vld [vmem:[%s382 + $0x18] sm:$0xff]
    %s387 = scalar_lea.vmem %s9, 1
    %v388 = vld [vmem:[%s387] sm:$0x1]
    %v390 = vperm.slane %v388, 0
    %392 = vmatpush.msra.mxu0 0.0
    %393 = vmatpush.msra.mxu0 0.0
    %394 = vmatpush.msra.mxu0 0.0
    %395 = vmatpush.msra.mxu0 0.0
    %396 = vmatpush.msra.mxu0 0.0
    %397 = vmatpush.msra.mxu0 0.0
    %398 = vmatpush.msra.mxu0 0.0
    %399 = vmatpush.msra.mxu0 0.0
    %400 = vmatpush.msra.mxu0 0.0
    %401 = vmatpush.msra.mxu0 0.0
    %402 = vmatpush.msra.mxu0 0.0
    %403 = vmatpush.msra.mxu0 0.0
    %404 = vmatpush.msra.mxu0 %v386
    %405 = vmatpush.msra.mxu0 %v385
    %406 = vmatpush.msra.mxu0 %v384
    %407 = vmatpush.msra.mxu0 %v383
    %408 = vmatmul.f32.gmra.mxu0 %v137
    %v409 = vpop.f32.mrf.mxu0
    %v410 = vadd.f32 %v390, %v409
    %411 = vmatmul.f32.gmra.mxu0 %v140
    %v412 = vpop.f32.mrf.mxu0
    %v413 = vadd.f32 %v390, %v412
    %414 = vdwg.mxu0
    %v416 = vsel %vm227, %v344, 0
    %v419 = vsel %vm227, %v347, 0
    %v422 = vsel %vm227, %v377, 0
    %v425 = vsel %vm227, %v380, 0
    %427 = vmatpush.xpose.msra.mxu0 0.0
    %428 = vmatpush.xpose.msra.mxu0 0.0
    %429 = vmatpush.xpose.msra.mxu0 0.0
    %430 = vmatpush.xpose.msra.mxu0 0.0
    %431 = vmatpush.xpose.msra.mxu0 0.0
    %432 = vmatpush.xpose.msra.mxu0 0.0
    %433 = vmatpush.xpose.msra.mxu0 0.0
    %434 = vmatpush.xpose.msra.mxu0 0.0
    %435 = vmatpush.xpose.msra.mxu0 0.0
    %436 = vmatpush.xpose.msra.mxu0 0.0
    %437 = vmatpush.xpose.msra.mxu0 0.0
    %438 = vmatpush.xpose.msra.mxu0 0.0
    %439 = vmatpush.xpose.msra.mxu0 0.0
    %440 = vmatpush.xpose.msra.mxu0 0.0
    %441 = vmatpush.xpose.msra.mxu0 %v425
    %442 = vmatpush.xpose.msra.mxu0 %v422
    %443 = vmatmul.f32.gmra.mxu0 %v416
    %v444 = vpop.f32.mrf.mxu0
    %v445 = vadd.f32 %v126, %v444
    %446 = vmatmul.f32.gmra.mxu0 %v419
    %v447 = vpop.f32.mrf.mxu0
    %v448 = vadd.f32 %v127, %v447
    %449 = vdwg.mxu0
    %v450 = vsel %vm263, %v445, -inf
    %451 = vmax.xlane.f32.xlu0 %v450
    %v452 = vpop.xlane.xlu0 %451
    %v453 = vsel %vm263, %v448, -inf
    %454 = vmax.xlane.f32.xlu0 %v453
    %v455 = vpop.xlane.xlu0 %454
    %v456 = vsub.f32 %v445, %v452
    %v457 = vsub.f32 %v448, %v455
    %v458 = vmul.f32 %v456, 1.442695
    %v459 = vpow.pop %v458
    %v460 = vmul.f32 %v457, 1.442695
    %v461 = vpow.pop %v460
    %v462 = vsel %vm263, %v459, 0.0
    %463 = vadd.xlane.f32.xlu0 %v462
    %v464 = vpop.xlane.xlu0 %463
    %v465 = vsel %vm263, %v461, 0.0
    %466 = vadd.xlane.f32.xlu0 %v465
    %v467 = vpop.xlane.xlu0 %466
    %v468 = vrcp.pop %v464
    %v469 = vrcp.pop %v467
    %v470 = vmul.f32 %v459, %v468
    %v471 = vmul.f32 %v461, %v469
    %v473 = vsel %vm263, %v470, 0
    %v476 = vsel %vm263, %v471, 0
    %478 = vmatpush.msra.mxu0 0.0
    %479 = vmatpush.msra.mxu0 0.0
    %480 = vmatpush.msra.mxu0 0.0
    %481 = vmatpush.msra.mxu0 0.0
    %482 = vmatpush.msra.mxu0 0.0
    %483 = vmatpush.msra.mxu0 0.0
    %484 = vmatpush.msra.mxu0 0.0
    %485 = vmatpush.msra.mxu0 0.0
    %486 = vmatpush.msra.mxu0 0.0
    %487 = vmatpush.msra.mxu0 0.0
    %488 = vmatpush.msra.mxu0 0.0
    %489 = vmatpush.msra.mxu0 0.0
    %490 = vmatpush.msra.mxu0 0.0
    %491 = vmatpush.msra.mxu0 0.0
    %492 = vmatpush.msra.mxu0 %v413
    %493 = vmatpush.msra.mxu0 %v410
    %494 = vmatmul.f32.gmra.mxu0 %v473
    %v495 = vpop.f32.mrf.mxu0
    %v496 = vadd.f32 0.0, %v495
    %497 = vmatmul.f32.gmra.mxu0 %v476
    %v498 = vpop.f32.mrf.mxu0
    %v499 = vadd.f32 0.0, %v498
    %500 = vdwg.mxu0
    %s501 = scalar_lea.vmem %s10, 8
    %v502 = vld [vmem:[%s501] sm:$0xff]
    %v504 = vsel %vm227, %v496, 0
    %v507 = vsel %vm227, %v499, 0
    %509 = vmatpush.msra.mxu0 0.0
    %510 = vmatpush.msra.mxu0 0.0
    %511 = vmatpush.msra.mxu0 0.0
    %512 = vmatpush.msra.mxu0 0.0
    %513 = vmatpush.msra.mxu0 0.0
    %514 = vmatpush.msra.mxu0 0.0
    %515 = vmatpush.msra.mxu0 0.0
    %516 = vmatpush.msra.mxu0 0.0
    %517 = vmatpush.msra.mxu0 0.0
    %518 = vmatpush.msra.mxu0 0.0
    %519 = vmatpush.msra.mxu0 0.0
    %520 = vmatpush.msra.mxu0 0.0
    %521 = vmatpush.msra.mxu0 0.0
    %522 = vmatpush.msra.mxu0 0.0
    %523 = vmatpush.msra.mxu0 0.0
    %524 = vmatpush.msra.mxu0 %v502
    %525 = vmatmul.f32.gmra.mxu0 %v504
    %v526 = vpop.f32.mrf.mxu0
    %v527 = vadd.f32 0.0, %v526
    %528 = vmatmul.f32.gmra.mxu0 %v507
    %v529 = vpop.f32.mrf.mxu0
    %v530 = vadd.f32 0.0, %v529
    %531 = vdwg.mxu0
    %v533 = vsel %vm227, %v310, 0
    %v536 = vsel %vm227, %v313, 0
    %538 = vmatpush.msra.mxu0 0.0
    %539 = vmatpush.msra.mxu0 0.0
    %540 = vmatpush.msra.mxu0 0.0
    %541 = vmatpush.msra.mxu0 0.0
    %542 = vmatpush.msra.mxu0 0.0
    %543 = vmatpush.msra.mxu0 0.0
    %544 = vmatpush.msra.mxu0 0.0
    %545 = vmatpush.msra.mxu0 0.0
    %546 = vmatpush.msra.mxu0 0.0
    %547 = vmatpush.msra.mxu0 0.0
    %548 = vmatpush.msra.mxu0 0.0
    %549 = vmatpush.msra.mxu0 0.0
    %550 = vmatpush.msra.mxu0 0.0
    %551 = vmatpush.msra.mxu0 0.0
    %552 = vmatpush.msra.mxu0 0.0
    %553 = vmatpush.msra.mxu0 %v315
    %554 = vmatmul.f32.gmra.mxu0 %v533
    %v555 = vpop.f32.mrf.mxu0
    %v556 = vadd.f32 %v527, %v555
    %557 = vmatmul.f32.gmra.mxu0 %v536
    %v558 = vpop.f32.mrf.mxu0
    %v559 = vadd.f32 %v530, %v558
    %560 = vdwg.mxu0
    %s561 = scalar_lea.vmem %s4, 64
    %v562 = vld [vmem:[%s561] sm:$0xff]
    %v563 = vld [vmem:[%s561 + $0x8] sm:$0xff]
    %v564 = vld [vmem:[%s561 + $0x10] sm:$0xff]
    %v565 = vld [vmem:[%s561 + $0x18] sm:$0xff]
    %s566 = scalar_lea.vmem %s7, 2
    %v567 = vld [vmem:[%s566] sm:$0x1]
    %v569 = vperm.slane %v567, 0
    %571 = vmatpush.msra.mxu0 0.0
    %572 = vmatpush.msra.mxu0 0.0
    %573 = vmatpush.msra.mxu0 0.0
    %574 = vmatpush.msra.mxu0 0.0
    %575 = vmatpush.msra.mxu0 0.0
    %576 = vmatpush.msra.mxu0 0.0
    %577 = vmatpush.msra.mxu0 0.0
    %578 = vmatpush.msra.mxu0 0.0
    %579 = vmatpush.msra.mxu0 0.0
    %580 = vmatpush.msra.mxu0 0.0
    %581 = vmatpush.msra.mxu0 0.0
    %582 = vmatpush.msra.mxu0 0.0
    %583 = vmatpush.msra.mxu0 %v565
    %584 = vmatpush.msra.mxu0 %v564
    %585 = vmatpush.msra.mxu0 %v563
    %586 = vmatpush.msra.mxu0 %v562
    %587 = vmatmul.f32.gmra.mxu0 %v137
    %v588 = vpop.f32.mrf.mxu0
    %v589 = vadd.f32 %v569, %v588
    %590 = vmatmul.f32.gmra.mxu0 %v140
    %v591 = vpop.f32.mrf.mxu0
    %v592 = vadd.f32 %v569, %v591
    %593 = vdwg.mxu0
    %s594 = scalar_lea.vmem %s5, 64
    %v595 = vld [vmem:[%s594] sm:$0xff]
    %v596 = vld [vmem:[%s594 + $0x8] sm:$0xff]
    %v597 = vld [vmem:[%s594 + $0x10] sm:$0xff]
    %v598 = vld [vmem:[%s594 + $0x18] sm:$0xff]
    %s599 = scalar_lea.vmem %s8, 2
    %v600 = vld [vmem:[%s599] sm:$0x1]
    %v602 = vperm.slane %v600, 0
    %604 = vmatpush.msra.mxu0 0.0
    %605 = vmatpush.msra.mxu0 0.0
    %606 = vmatpush.msra.mxu0 0.0
    %607 = vmatpush.msra.mxu0 0.0
    %608 = vmatpush.msra.mxu0 0.0
    %609 = vmatpush.msra.mxu0 0.0
    %610 = vmatpush.msra.mxu0 0.0
    %611 = vmatpush.msra.mxu0 0.0
    %612 = vmatpush.msra.mxu0 0.0
    %613 = vmatpush.msra.mxu0 0.0
    %614 = vmatpush.msra.mxu0 0.0
    %615 = vmatpush.msra.mxu0 0.0
    %616 = vmatpush.msra.mxu0 %v598
    %617 = vmatpush.msra.mxu0 %v597
    %618 = vmatpush.msra.mxu0 %v596
    %619 = vmatpush.msra.mxu0 %v595
    %620 = vmatmul.f32.gmra.mxu0 %v137
    %v621 = vpop.f32.mrf.mxu0
    %v622 = vadd.f32 %v602, %v621
    %623 = vmatmul.f32.gmra.mxu0 %v140
    %v624 = vpop.f32.mrf.mxu0
    %v625 = vadd.f32 %v602, %v624
    %626 = vdwg.mxu0
    %s627 = scalar_lea.vmem %s6, 64
    %v628 = vld [vmem:[%s627] sm:$0xff]
    %v629 = vld [vmem:[%s627 + $0x8] sm:$0xff]
    %v630 = vld [vmem:[%s627 + $0x10] sm:$0xff]
    %v631 = vld [vmem:[%s627 + $0x18] sm:$0xff]
    %s632 = scalar_lea.vmem %s9, 2
    %v633 = vld [vmem:[%s632] sm:$0x1]
    %v635 = vperm.slane %v633, 0
    %637 = vmatpush.msra.mxu0 0.0
    %638 = vmatpush.msra.mxu0 0.0
    %639 = vmatpush.msra.mxu0 0.0
    %640 = vmatpush.msra.mxu0 0.0
    %641 = vmatpush.msra.mxu0 0.0
    %642 = vmatpush.msra.mxu0 0.0
    %643 = vmatpush.msra.mxu0 0.0
    %644 = vmatpush.msra.mxu0 0.0
    %645 = vmatpush.msra.mxu0 0.0
    %646 = vmatpush.msra.mxu0 0.0
    %647 = vmatpush.msra.mxu0 0.0
    %648 = vmatpush.msra.mxu0 0.0
    %649 = vmatpush.msra.mxu0 %v631
    %650 = vmatpush.msra.mxu0 %v630
    %651 = vmatpush.msra.mxu0 %v629
    %652 = vmatpush.msra.mxu0 %v628
    %653 = vmatmul.f32.gmra.mxu0 %v137
    %v654 = vpop.f32.mrf.mxu0
    %v655 = vadd.f32 %v635, %v654
    %656 = vmatmul.f32.gmra.mxu0 %v140
    %v657 = vpop.f32.mrf.mxu0
    %v658 = vadd.f32 %v635, %v657
    %659 = vdwg.mxu0
    %v661 = vsel %vm227, %v589, 0
    %v664 = vsel %vm227, %v592, 0
    %v667 = vsel %vm227, %v622, 0
    %v670 = vsel %vm227, %v625, 0
    %672 = vmatpush.xpose.msra.mxu0 0.0
    %673 = vmatpush.xpose.msra.mxu0 0.0
    %674 = vmatpush.xpose.msra.mxu0 0.0
    %675 = vmatpush.xpose.msra.mxu0 0.0
    %676 = vmatpush.xpose.msra.mxu0 0.0
    %677 = vmatpush.xpose.msra.mxu0 0.0
    %678 = vmatpush.xpose.msra.mxu0 0.0
    %679 = vmatpush.xpose.msra.mxu0 0.0
    %680 = vmatpush.xpose.msra.mxu0 0.0
    %681 = vmatpush.xpose.msra.mxu0 0.0
    %682 = vmatpush.xpose.msra.mxu0 0.0
    %683 = vmatpush.xpose.msra.mxu0 0.0
    %684 = vmatpush.xpose.msra.mxu0 0.0
    %685 = vmatpush.xpose.msra.mxu0 0.0
    %686 = vmatpush.xpose.msra.mxu0 %v670
    %687 = vmatpush.xpose.msra.mxu0 %v667
    %688 = vmatmul.f32.gmra.mxu0 %v661
    %v689 = vpop.f32.mrf.mxu0
    %v690 = vadd.f32 %v126, %v689
    %691 = vmatmul.f32.gmra.mxu0 %v664
    %v692 = vpop.f32.mrf.mxu0
    %v693 = vadd.f32 %v127, %v692
    %694 = vdwg.mxu0
    %v695 = vsel %vm263, %v690, -inf
    %696 = vmax.xlane.f32.xlu0 %v695
    %v697 = vpop.xlane.xlu0 %696
    %v698 = vsel %vm263, %v693, -inf
    %699 = vmax.xlane.f32.xlu0 %v698
    %v700 = vpop.xlane.xlu0 %699
    %v701 = vsub.f32 %v690, %v697
    %v702 = vsub.f32 %v693, %v700
    %v703 = vmul.f32 %v701, 1.442695
    %v704 = vpow.pop %v703
    %v705 = vmul.f32 %v702, 1.442695
    %v706 = vpow.pop %v705
    %v707 = vsel %vm263, %v704, 0.0
    %708 = vadd.xlane.f32.xlu0 %v707
    %v709 = vpop.xlane.xlu0 %708
    %v710 = vsel %vm263, %v706, 0.0
    %711 = vadd.xlane.f32.xlu0 %v710
    %v712 = vpop.xlane.xlu0 %711
    %v713 = vrcp.pop %v709
    %v714 = vrcp.pop %v712
    %v715 = vmul.f32 %v704, %v713
    %v716 = vmul.f32 %v706, %v714
    %v718 = vsel %vm263, %v715, 0
    %v721 = vsel %vm263, %v716, 0
    %723 = vmatpush.msra.mxu0 0.0
    %724 = vmatpush.msra.mxu0 0.0
    %725 = vmatpush.msra.mxu0 0.0
    %726 = vmatpush.msra.mxu0 0.0
    %727 = vmatpush.msra.mxu0 0.0
    %728 = vmatpush.msra.mxu0 0.0
    %729 = vmatpush.msra.mxu0 0.0
    %730 = vmatpush.msra.mxu0 0.0
    %731 = vmatpush.msra.mxu0 0.0
    %732 = vmatpush.msra.mxu0 0.0
    %733 = vmatpush.msra.mxu0 0.0
    %734 = vmatpush.msra.mxu0 0.0
    %735 = vmatpush.msra.mxu0 0.0
    %736 = vmatpush.msra.mxu0 0.0
    %737 = vmatpush.msra.mxu0 %v658
    %738 = vmatpush.msra.mxu0 %v655
    %739 = vmatmul.f32.gmra.mxu0 %v718
    %v740 = vpop.f32.mrf.mxu0
    %v741 = vadd.f32 0.0, %v740
    %742 = vmatmul.f32.gmra.mxu0 %v721
    %v743 = vpop.f32.mrf.mxu0
    %v744 = vadd.f32 0.0, %v743
    %745 = vdwg.mxu0
    %s746 = scalar_lea.vmem %s10, 16
    %v747 = vld [vmem:[%s746] sm:$0xff]
    %v749 = vsel %vm227, %v741, 0
    %v752 = vsel %vm227, %v744, 0
    %754 = vmatpush.msra.mxu0 0.0
    %755 = vmatpush.msra.mxu0 0.0
    %756 = vmatpush.msra.mxu0 0.0
    %757 = vmatpush.msra.mxu0 0.0
    %758 = vmatpush.msra.mxu0 0.0
    %759 = vmatpush.msra.mxu0 0.0
    %760 = vmatpush.msra.mxu0 0.0
    %761 = vmatpush.msra.mxu0 0.0
    %762 = vmatpush.msra.mxu0 0.0
    %763 = vmatpush.msra.mxu0 0.0
    %764 = vmatpush.msra.mxu0 0.0
    %765 = vmatpush.msra.mxu0 0.0
    %766 = vmatpush.msra.mxu0 0.0
    %767 = vmatpush.msra.mxu0 0.0
    %768 = vmatpush.msra.mxu0 0.0
    %769 = vmatpush.msra.mxu0 %v747
    %770 = vmatmul.f32.gmra.mxu0 %v749
    %v771 = vpop.f32.mrf.mxu0
    %v772 = vadd.f32 0.0, %v771
    %773 = vmatmul.f32.gmra.mxu0 %v752
    %v774 = vpop.f32.mrf.mxu0
    %v775 = vadd.f32 0.0, %v774
    %776 = vdwg.mxu0
    %v777 = vadd.f32 %v556, %v772
    %v778 = vadd.f32 %v559, %v775
    %s779 = scalar_lea.vmem %s4, 96
    %v780 = vld [vmem:[%s779] sm:$0xff]
    %v781 = vld [vmem:[%s779 + $0x8] sm:$0xff]
    %v782 = vld [vmem:[%s779 + $0x10] sm:$0xff]
    %v783 = vld [vmem:[%s779 + $0x18] sm:$0xff]
    %s784 = scalar_lea.vmem %s7, 3
    %v785 = vld [vmem:[%s784] sm:$0x1]
    %v787 = vperm.slane %v785, 0
    %789 = vmatpush.msra.mxu0 0.0
    %790 = vmatpush.msra.mxu0 0.0
    %791 = vmatpush.msra.mxu0 0.0
    %792 = vmatpush.msra.mxu0 0.0
    %793 = vmatpush.msra.mxu0 0.0
    %794 = vmatpush.msra.mxu0 0.0
    %795 = vmatpush.msra.mxu0 0.0
    %796 = vmatpush.msra.mxu0 0.0
    %797 = vmatpush.msra.mxu0 0.0
    %798 = vmatpush.msra.mxu0 0.0
    %799 = vmatpush.msra.mxu0 0.0
    %800 = vmatpush.msra.mxu0 0.0
    %801 = vmatpush.msra.mxu0 %v783
    %802 = vmatpush.msra.mxu0 %v782
    %803 = vmatpush.msra.mxu0 %v781
    %804 = vmatpush.msra.mxu0 %v780
    %805 = vmatmul.f32.gmra.mxu0 %v137
    %v806 = vpop.f32.mrf.mxu0
    %v807 = vadd.f32 %v787, %v806
    %808 = vmatmul.f32.gmra.mxu0 %v140
    %v809 = vpop.f32.mrf.mxu0
    %v810 = vadd.f32 %v787, %v809
    %811 = vdwg.mxu0
    %s812 = scalar_lea.vmem %s5, 96
    %v813 = vld [vmem:[%s812] sm:$0xff]
    %v814 = vld [vmem:[%s812 + $0x8] sm:$0xff]
    %v815 = vld [vmem:[%s812 + $0x10] sm:$0xff]
    %v816 = vld [vmem:[%s812 + $0x18] sm:$0xff]
    %s817 = scalar_lea.vmem %s8, 3
    %v818 = vld [vmem:[%s817] sm:$0x1]
    %v820 = vperm.slane %v818, 0
    %822 = vmatpush.msra.mxu0 0.0
    %823 = vmatpush.msra.mxu0 0.0
    %824 = vmatpush.msra.mxu0 0.0
    %825 = vmatpush.msra.mxu0 0.0
    %826 = vmatpush.msra.mxu0 0.0
    %827 = vmatpush.msra.mxu0 0.0
    %828 = vmatpush.msra.mxu0 0.0
    %829 = vmatpush.msra.mxu0 0.0
    %830 = vmatpush.msra.mxu0 0.0
    %831 = vmatpush.msra.mxu0 0.0
    %832 = vmatpush.msra.mxu0 0.0
    %833 = vmatpush.msra.mxu0 0.0
    %834 = vmatpush.msra.mxu0 %v816
    %835 = vmatpush.msra.mxu0 %v815
    %836 = vmatpush.msra.mxu0 %v814
    %837 = vmatpush.msra.mxu0 %v813
    %838 = vmatmul.f32.gmra.mxu0 %v137
    %v839 = vpop.f32.mrf.mxu0
    %v840 = vadd.f32 %v820, %v839
    %841 = vmatmul.f32.gmra.mxu0 %v140
    %v842 = vpop.f32.mrf.mxu0
    %v843 = vadd.f32 %v820, %v842
    %844 = vdwg.mxu0
    %s845 = scalar_lea.vmem %s6, 96
    %v846 = vld [vmem:[%s845] sm:$0xff]
    %v847 = vld [vmem:[%s845 + $0x8] sm:$0xff]
    %v848 = vld [vmem:[%s845 + $0x10] sm:$0xff]
    %v849 = vld [vmem:[%s845 + $0x18] sm:$0xff]
    %s850 = scalar_lea.vmem %s9, 3
    %v851 = vld [vmem:[%s850] sm:$0x1]
    %v853 = vperm.slane %v851, 0
    %855 = vmatpush.msra.mxu0 0.0
    %856 = vmatpush.msra.mxu0 0.0
    %857 = vmatpush.msra.mxu0 0.0
    %858 = vmatpush.msra.mxu0 0.0
    %859 = vmatpush.msra.mxu0 0.0
    %860 = vmatpush.msra.mxu0 0.0
    %861 = vmatpush.msra.mxu0 0.0
    %862 = vmatpush.msra.mxu0 0.0
    %863 = vmatpush.msra.mxu0 0.0
    %864 = vmatpush.msra.mxu0 0.0
    %865 = vmatpush.msra.mxu0 0.0
    %866 = vmatpush.msra.mxu0 0.0
    %867 = vmatpush.msra.mxu0 %v849
    %868 = vmatpush.msra.mxu0 %v848
    %869 = vmatpush.msra.mxu0 %v847
    %870 = vmatpush.msra.mxu0 %v846
    %871 = vmatmul.f32.gmra.mxu0 %v137
    %v872 = vpop.f32.mrf.mxu0
    %v873 = vadd.f32 %v853, %v872
    %874 = vmatmul.f32.gmra.mxu0 %v140
    %v875 = vpop.f32.mrf.mxu0
    %v876 = vadd.f32 %v853, %v875
    %877 = vdwg.mxu0
    %v879 = vsel %vm227, %v807, 0
    %v882 = vsel %vm227, %v810, 0
    %v885 = vsel %vm227, %v840, 0
    %v888 = vsel %vm227, %v843, 0
    %890 = vmatpush.xpose.msra.mxu0 0.0
    %891 = vmatpush.xpose.msra.mxu0 0.0
    %892 = vmatpush.xpose.msra.mxu0 0.0
    %893 = vmatpush.xpose.msra.mxu0 0.0
    %894 = vmatpush.xpose.msra.mxu0 0.0
    %895 = vmatpush.xpose.msra.mxu0 0.0
    %896 = vmatpush.xpose.msra.mxu0 0.0
    %897 = vmatpush.xpose.msra.mxu0 0.0
    %898 = vmatpush.xpose.msra.mxu0 0.0
    %899 = vmatpush.xpose.msra.mxu0 0.0
    %900 = vmatpush.xpose.msra.mxu0 0.0
    %901 = vmatpush.xpose.msra.mxu0 0.0
    %902 = vmatpush.xpose.msra.mxu0 0.0
    %903 = vmatpush.xpose.msra.mxu0 0.0
    %904 = vmatpush.xpose.msra.mxu0 %v888
    %905 = vmatpush.xpose.msra.mxu0 %v885
    %906 = vmatmul.f32.gmra.mxu0 %v879
    %v907 = vpop.f32.mrf.mxu0
    %v908 = vadd.f32 %v126, %v907
    %909 = vmatmul.f32.gmra.mxu0 %v882
    %v910 = vpop.f32.mrf.mxu0
    %v911 = vadd.f32 %v127, %v910
    %912 = vdwg.mxu0
    %v913 = vsel %vm263, %v908, -inf
    %914 = vmax.xlane.f32.xlu0 %v913
    %v915 = vpop.xlane.xlu0 %914
    %v916 = vsel %vm263, %v911, -inf
    %917 = vmax.xlane.f32.xlu0 %v916
    %v918 = vpop.xlane.xlu0 %917
    %v919 = vsub.f32 %v908, %v915
    %v920 = vsub.f32 %v911, %v918
    %v921 = vmul.f32 %v919, 1.442695
    %v922 = vpow.pop %v921
    %v923 = vmul.f32 %v920, 1.442695
    %v924 = vpow.pop %v923
    %v925 = vsel %vm263, %v922, 0.0
    %926 = vadd.xlane.f32.xlu0 %v925
    %v927 = vpop.xlane.xlu0 %926
    %v928 = vsel %vm263, %v924, 0.0
    %929 = vadd.xlane.f32.xlu0 %v928
    %v930 = vpop.xlane.xlu0 %929
    %v931 = vrcp.pop %v927
    %v932 = vrcp.pop %v930
    %v933 = vmul.f32 %v922, %v931
    %v934 = vmul.f32 %v924, %v932
    %v936 = vsel %vm263, %v933, 0
    %v939 = vsel %vm263, %v934, 0
    %941 = vmatpush.msra.mxu0 0.0
    %942 = vmatpush.msra.mxu0 0.0
    %943 = vmatpush.msra.mxu0 0.0
    %944 = vmatpush.msra.mxu0 0.0
    %945 = vmatpush.msra.mxu0 0.0
    %946 = vmatpush.msra.mxu0 0.0
    %947 = vmatpush.msra.mxu0 0.0
    %948 = vmatpush.msra.mxu0 0.0
    %949 = vmatpush.msra.mxu0 0.0
    %950 = vmatpush.msra.mxu0 0.0
    %951 = vmatpush.msra.mxu0 0.0
    %952 = vmatpush.msra.mxu0 0.0
    %953 = vmatpush.msra.mxu0 0.0
    %954 = vmatpush.msra.mxu0 0.0
    %955 = vmatpush.msra.mxu0 %v876
    %956 = vmatpush.msra.mxu0 %v873
    %957 = vmatmul.f32.gmra.mxu0 %v936
    %v958 = vpop.f32.mrf.mxu0
    %v959 = vadd.f32 0.0, %v958
    %960 = vmatmul.f32.gmra.mxu0 %v939
    %v961 = vpop.f32.mrf.mxu0
    %v962 = vadd.f32 0.0, %v961
    %963 = vdwg.mxu0
    %s964 = scalar_lea.vmem %s10, 24
    %v965 = vld [vmem:[%s964] sm:$0xff]
    %v967 = vsel %vm227, %v959, 0
    %v970 = vsel %vm227, %v962, 0
    %972 = vmatpush.msra.mxu0 0.0
    %973 = vmatpush.msra.mxu0 0.0
    %974 = vmatpush.msra.mxu0 0.0
    %975 = vmatpush.msra.mxu0 0.0
    %976 = vmatpush.msra.mxu0 0.0
    %977 = vmatpush.msra.mxu0 0.0
    %978 = vmatpush.msra.mxu0 0.0
    %979 = vmatpush.msra.mxu0 0.0
    %980 = vmatpush.msra.mxu0 0.0
    %981 = vmatpush.msra.mxu0 0.0
    %982 = vmatpush.msra.mxu0 0.0
    %983 = vmatpush.msra.mxu0 0.0
    %984 = vmatpush.msra.mxu0 0.0
    %985 = vmatpush.msra.mxu0 0.0
    %986 = vmatpush.msra.mxu0 0.0
    %987 = vmatpush.msra.mxu0 %v965
    %988 = vmatmul.f32.gmra.mxu0 %v967
    %v989 = vpop.f32.mrf.mxu0
    %v990 = vadd.f32 0.0, %v989
    %991 = vmatmul.f32.gmra.mxu0 %v970
    %v992 = vpop.f32.mrf.mxu0
    %v993 = vadd.f32 0.0, %v992
    %994 = vdwg.mxu0
    %v995 = vadd.f32 %v777, %v990
    %v996 = vadd.f32 %v778, %v993
    %v997 = vadd.f32 %v60, %v995
    %v998 = vadd.f32 %v61, %v996
    %v999 = vld [vmem:[%s11] sm:$0x1]
    %v1001 = vperm.slane %v999, 0
    %v1003 = vadd.f32 %v997, %v1001
    %v1004 = vadd.f32 %v998, %v1001
    %v1005 = vld [vmem:[%s12] sm:$0x1]
    %v1006 = vld [vmem:[%s13] sm:$0x1]
    %v1007 = vsel %vm64, %v1003, 0.0
    %1008 = vadd.xlane.f32.xlu0 %v1007
    %v1009 = vpop.xlane.xlu0 %1008
    %v1010 = vsel %vm64, %v1004, 0.0
    %1011 = vadd.xlane.f32.xlu0 %v1010
    %v1012 = vpop.xlane.xlu0 %1011
    %v1013 = vmul.f32 %v1009, %v77
    %v1014 = vmul.f32 %v1012, %v77
    %v1015 = vsub.f32 %v1003, %v1013
    %v1016 = vsub.f32 %v1004, %v1014
    %v1017 = vmul.f32 %v1015, %v1015
    %v1018 = vmul.f32 %v1016, %v1016
    %v1019 = vsel %vm64, %v1017, 0.0
    %1020 = vadd.xlane.f32.xlu0 %v1019
    %v1021 = vpop.xlane.xlu0 %1020
    %v1022 = vsel %vm64, %v1018, 0.0
    %1023 = vadd.xlane.f32.xlu0 %v1022
    %v1024 = vpop.xlane.xlu0 %1023
    %v1025 = vmul.f32 %v1021, %v77
    %v1026 = vmul.f32 %v1024, %v77
    %v1027 = vadd.f32 %v1025, 1e-05
    %v1028 = vadd.f32 %v1026, 1e-05
    %v1029 = vrsqrt.pop %v1027
    %v1030 = vmul.f32 %v1029, %v1027
    %v1031 = vmul.f32 %v1030, %v1029
    %v1032 = vmul.f32 0.5, %v1031
    %v1033 = vsub.f32 1.5, %v1032
    %v1034 = vmul.f32 %v1029, %v1033
    %vm1035 = vweird.f32 %v1027
    %vm1036 = vweird.f32 %v1029
    %vm1037 = vmor %vm1035, %vm1036
    %v1038 = vsel %vm1037, %v1029, %v1034
    %v1039 = vrsqrt.pop %v1028
    %v1040 = vmul.f32 %v1039, %v1028
    %v1041 = vmul.f32 %v1040, %v1039
    %v1042 = vmul.f32 0.5, %v1041
    %v1043 = vsub.f32 1.5, %v1042
    %v1044 = vmul.f32 %v1039, %v1043
    %vm1045 = vweird.f32 %v1028
    %vm1046 = vweird.f32 %v1039
    %vm1047 = vmor %vm1045, %vm1046
    %v1048 = vsel %vm1047, %v1039, %v1044
    %v1049 = vmul.f32 %v1015, %v1038
    %v1050 = vmul.f32 %v1016, %v1048
    %v1052 = vperm.slane %v1005, 0
    %v1054 = vmul.f32 %v1049, %v1052
    %v1055 = vmul.f32 %v1050, %v1052
    %v1057 = vperm.slane %v1006, 0
    %v1059 = vadd.f32 %v1054, %v1057
    %v1060 = vadd.f32 %v1055, %v1057
    %v1061 = vld [vmem:[%s14] sm:$0xff]
    %v1062 = vld [vmem:[%s14 + $0x8] sm:$0xff]
    %v1063 = vld [vmem:[%s14 + $0x10] sm:$0xff]
    %v1064 = vld [vmem:[%s14 + $0x18] sm:$0xff]
    %v1065 = vld [vmem:[%s15] sm:$0x1]
    %v1067 = vperm.slane %v1065, 0
    %v1070 = vsel %vm64, %v1059, 0
    %v1073 = vsel %vm64, %v1060, 0
    %1075 = vmatpush.msra.mxu0 0.0
    %1076 = vmatpush.msra.mxu0 0.0
    %1077 = vmatpush.msra.mxu0 0.0
    %1078 = vmatpush.msra.mxu0 0.0
    %1079 = vmatpush.msra.mxu0 0.0
    %1080 = vmatpush.msra.mxu0 0.0
    %1081 = vmatpush.msra.mxu0 0.0
    %1082 = vmatpush.msra.mxu0 0.0
    %1083 = vmatpush.msra.mxu0 0.0
    %1084 = vmatpush.msra.mxu0 0.0
    %1085 = vmatpush.msra.mxu0 0.0
    %1086 = vmatpush.msra.mxu0 0.0
    %1087 = vmatpush.msra.mxu0 %v1064
    %1088 = vmatpush.msra.mxu0 %v1063
    %1089 = vmatpush.msra.mxu0 %v1062
    %1090 = vmatpush.msra.mxu0 %v1061
    %1091 = vmatmul.f32.gmra.mxu0 %v1070
    %v1092 = vpop.f32.mrf.mxu0
    %v1093 = vadd.f32 %v1067, %v1092
    %1094 = vmatmul.f32.gmra.mxu0 %v1073
    %v1095 = vpop.f32.mrf.mxu0
    %v1096 = vadd.f32 %v1067, %v1095
    %1097 = vdwg.mxu0
    %v1098 = vmul.f32 %v1093, 0.5
    %v1099 = vmul.f32 %v1096, 0.5
    %v1100 = vmul.f32 %v1093, 0.044715
    %v1101 = vmul.f32 %v1096, 0.044715
    %v1102 = vmul.f32 %v1100, %v1093
    %v1103 = vmul.f32 %v1101, %v1096
    %v1104 = vmul.f32 %v1102, %v1093
    %v1105 = vmul.f32 %v1103, %v1096
    %v1106 = vadd.f32 %v1093, %v1104
    %v1107 = vadd.f32 %v1096, %v1105
    %v1108 = vmul.f32 %v1106, 0.7978846
    %v1109 = vmul.f32 %v1107, 0.7978846
    %v1110 = vtanh.pop %v1108
    %v1111 = vtanh.pop %v1109
    %v1112 = vadd.f32 %v1110, 1.0
    %v1113 = vadd.f32 %v1111, 1.0
    %v1114 = vmul.f32 %v1098, %v1112
    %v1115 = vmul.f32 %v1099, %v1113
    %v1116 = vld [vmem:[%s16] sm:$0xff]
    %v1117 = vld [vmem:[%s16 + $0x8] sm:$0xff]
    %v1118 = vld [vmem:[%s16 + $0x10] sm:$0xff]
    %v1119 = vld [vmem:[%s16 + $0x18] sm:$0xff]
    %v1120 = vld [vmem:[%s16 + $0x20] sm:$0xff]
    %v1121 = vld [vmem:[%s16 + $0x28] sm:$0xff]
    %v1122 = vld [vmem:[%s16 + $0x30] sm:$0xff]
    %v1123 = vld [vmem:[%s16 + $0x38] sm:$0xff]
    %v1124 = vld [vmem:[%s16 + $0x40] sm:$0xff]
    %v1125 = vld [vmem:[%s16 + $0x48] sm:$0xff]
    %v1126 = vld [vmem:[%s16 + $0x50] sm:$0xff]
    %v1127 = vld [vmem:[%s16 + $0x58] sm:$0xff]
    %v1128 = vld [vmem:[%s16 + $0x60] sm:$0xff]
    %v1129 = vld [vmem:[%s16 + $0x68] sm:$0xff]
    %v1130 = vld [vmem:[%s16 + $0x70] sm:$0xff]
    %v1131 = vld [vmem:[%s16 + $0x78] sm:$0xff]
    %v1132 = vld [vmem:[%s17] sm:$0x1]
    %v1134 = vperm.slane %v1132, 0
    %1136 = vmatpush.msra.mxu0 %v1131
    %1137 = vmatpush.msra.mxu0 %v1130
    %1138 = vmatpush.msra.mxu0 %v1129
    %1139 = vmatpush.msra.mxu0 %v1128
    %1140 = vmatpush.msra.mxu0 %v1127
    %1141 = vmatpush.msra.mxu0 %v1126
    %1142 = vmatpush.msra.mxu0 %v1125
    %1143 = vmatpush.msra.mxu0 %v1124
    %1144 = vmatpush.msra.mxu0 %v1123
    %1145 = vmatpush.msra.mxu0 %v1122
    %1146 = vmatpush.msra.mxu0 %v1121
    %1147 = vmatpush.msra.mxu0 %v1120
    %1148 = vmatpush.msra.mxu0 %v1119
    %1149 = vmatpush.msra.mxu0 %v1118
    %1150 = vmatpush.msra.mxu0 %v1117
    %1151 = vmatpush.msra.mxu0 %v1116
    %1152 = vmatmul.f32.gmra.mxu0 %v1114
    %v1153 = vpop.f32.mrf.mxu0
    %v1154 = vadd.f32 %v1134, %v1153
    %1155 = vmatmul.f32.gmra.mxu0 %v1115
    %v1156 = vpop.f32.mrf.mxu0
    %v1157 = vadd.f32 %v1134, %v1156
    %1158 = vdwg.mxu0
    %v1159 = vadd.f32 %v1003, %v1154
    %v1160 = vadd.f32 %v1004, %v1157
    %1161 = vst.msk [vmem:[#allocation2] sm:$0xff] %vm64, %v1159
    %1162 = vst.msk [vmem:[#allocation2 + $0x8] sm:$0xff] %vm64, %v1160
    // Predicated region
    $region74: #{tpu_custom_call.1} parent=1 // pred_check
      _
    $region75: #{tpu_custom_call.1} parent=1 // pred_check_branch
      %1164 = sbr.rel (0) target = $region77
    $region76: #{tpu_custom_call.1} parent=1 // pred_region
      %1166 = vsyncadd [#allocation3], 0
      %s1167 = sshll.u32 [#allocation2], 4
      %s1168 = int_to_ptr.vmem [resolvable:$true] %s1167
      %s1169 = sshll.u32 %s18, 4
      %s1170 = int_to_ptr.hbm [resolvable:$true] %s1169
      %1175 = dma.vmem_to_hbm [thread:$0]  %s1168, 256, %s1170, [#allocation3], 128, 128, 8
    $region77: #{tpu_custom_call.1} parent=1 // pred_fallthru
      _
    // Predicated region
    $region78: #{tpu_custom_call.1} parent=1 // pred_check
      _
    $region79: #{tpu_custom_call.1} parent=1 // pred_check_branch
      %1177 = sbr.rel (0) target = $region81
    $region80: #{tpu_custom_call.1} parent=1 // pred_region
      %1179 = dma.done [#allocation3], 256
    $region81: #{tpu_custom_call.1} parent=1 // pred_fallthru
      _
    %1180 = vsyncpa [#allocation3], 1

</llo_original>
